<compile_context>
chip_gen: v5e
topology: v5e:2x2
jax: 0.10.0
libtpu: 0.0.40
codegen_flags: <defaults>
</compile_context>

<pallas_src>
import jax
import jax.numpy as jnp
from jax import lax
from jax.experimental import pallas as pl
from jax.experimental.pallas import tpu as pltpu


ALL_TAPS = tuple((dy, dx) for dy in (-1, 0, 1) for dx in (-1, 0, 1))
OFF_TAPS = tuple(t for t in ALL_TAPS if t != (0, 0))


def _round_up(x, m):
    return (x + m - 1) // m * m


def _pick_imgs_per_step(n, hw, target_lanes=2048):
    """Fold images onto the lane axis (amortises per-step overhead / MXU weight
    pushes) but keep >= 2 grid steps when N allows it (v7x has 2 TensorCores)."""
    ips = max(1, min(n, max(1, target_lanes // hw)))
    while ips > 1 and n // ips < 2:
        ips -= 1
    while n % ips != 0:
        ips -= 1
    return ips


def _make_kernel(c0, group_cs, w_img, lanes, k_prefix, mxu_dtype):
    """group_cs: zero-padded channel count of each dense-block group
    (x, out0, out1, out2); k_prefix[L]: bank rows visible to layer L's matmul."""
    group_off = []
    off = 0
    for c in group_cs:
        group_off.append(off)
        off += 9 * c

    def kernel(masks_ref, x_ref,
               w0, b0, a0, w1, b1, a1, w2, b2, a2, w3, b3, a3,
               o_ref, bank_ref):
        # Hoisted mask broadcasts: built once, reused by every group/layer
        # (JAX does not CSE broadcast_in_dim).
        m8 = masks_ref[...]                                       # (8, lanes) f32
        mask_b = {}
        for size in sorted(set(group_cs)):
            for ti, (dy, dx) in enumerate(OFF_TAPS):
                mask_b[(size, dy, dx)] = jnp.broadcast_to(
                    m8[ti:ti + 1, :], (size, lanes))

        def write_group_taps(g, feat):
            # feat: (group_cs[g], lanes) f32.  Write the 9 shifted taps of this
            # NEW channel group straight into the persistent bank; every slice
            # offset is a static multiple of 8 sublanes.
            cg = group_cs[g]
            base = group_off[g]
            for ti, (dy, dx) in enumerate(ALL_TAPS):
                if dy == 0 and dx == 0:
                    shifted = feat
                else:
                    s = (-(dy * w_img + dx)) % lanes              # roll semantics
                    shifted = pltpu.roll(feat, s, 1) * mask_b[(cg, dy, dx)]
                bank_ref[base + ti * cg: base + (ti + 1) * cg, :] = shifted

        def conv_prelu(layer, w_ref, b_ref, a_ref):
            # One im2col matmul over the contiguous bank prefix, bf16 on MXU.
            patch = bank_ref[:k_prefix[layer], :].astype(mxu_dtype)
            y = jnp.dot(w_ref[...], patch, preferred_element_type=jnp.float32)
            y = y + b_ref[...]                                    # bias (f32)
            return jnp.where(y > 0, y, a_ref[...] * y)            # per-ch PReLU

        x_f32 = x_ref[0].astype(jnp.float32)                      # (C0p, lanes)
        write_group_taps(0, x_f32)
        out0 = conv_prelu(0, w0, b0, a0)
        write_group_taps(1, out0)
        out1 = conv_prelu(1, w1, b1, a1)
        write_group_taps(2, out1)
        out2 = conv_prelu(2, w2, b2, a2)
        write_group_taps(3, out2)
        out3 = conv_prelu(3, w3, b3, a3)                          # (C0, lanes)
        o_ref[0] = (out3 + x_f32[:c0]).astype(o_ref.dtype)        # residual add

    return kernel


def fused_denoising_block(x_nchw, params, *, mxu_dtype=jnp.bfloat16):
    """x_nchw: (N, C, H, W); params: 4 tuples of (w_oihw, bias, alpha)."""
    n, c0, h, w = x_nchw.shape
    hw = h * w
    c0p = _round_up(c0, 8)
    inner = params[0][0].shape[0]
    assert inner % 8 == 0, "inner_channels must be a multiple of 8"
    assert params[-1][0].shape[0] == c0, "out_channels must equal in_channels"

    # --- fold images onto the lane axis -------------------------------------
    ips = _pick_imgs_per_step(n, hw)
    steps = n // ips
    lanes = ips * hw
    x_fold = (x_nchw.reshape(steps, ips, c0, hw)
              .transpose(0, 2, 1, 3).reshape(steps, c0, lanes))
    x_pad = jnp.pad(x_fold, ((0, 0), (0, c0p - c0), (0, 0)))

    # --- host-side border masks for the 8 non-center taps, tiled per image ---
    pos = jnp.arange(hw, dtype=jnp.int32)
    row, col = pos // w, pos % w
    mask_rows = []
    for dy, dx in OFF_TAPS:
        m = ((col + dx >= 0) & (col + dx < w) &
             (row + dy >= 0) & (row + dy < h)).astype(jnp.float32)
        mask_rows.append(jnp.tile(m, ips))
    masks = jnp.stack(mask_rows, axis=0)                          # (8, lanes)

    # --- channel-group-major weight matrices (match the tap-bank K order) ----
    group_real = [c0, inner, inner, inner]
    group_pad = [c0p, inner, inner, inner]
    k_prefix, acc = [], 0
    for g in group_pad:
        acc += 9 * g
        k_prefix.append(acc)
    k_total = acc
    cum = [0]
    for g in group_real:
        cum.append(cum[-1] + g)

    w_mats, biases, alphas = [], [], []
    for layer, (wgt, b, a) in enumerate(params):
        cout = wgt.shape[0]
        parts = []
        for g in range(layer + 1):
            wg = wgt[:, cum[g]:cum[g + 1]]                        # (cout,gc,3,3)
            if group_pad[g] != group_real[g]:
                wg = jnp.pad(wg, ((0, 0), (0, group_pad[g] - group_real[g]),
                                  (0, 0), (0, 0)))
            # (cout,gc,3,3) -> (cout,ky,kx,gc) -> (cout, 9*gc): tap-major,
            # channel-minor within the group — matches bank row order.
            parts.append(jnp.transpose(wg, (0, 2, 3, 1))
                         .reshape(cout, 9 * group_pad[g]))
        w_mats.append(jnp.concatenate(parts, axis=1).astype(mxu_dtype))
        biases.append(b.reshape(cout, 1).astype(jnp.float32))
        alphas.append(a.reshape(cout, 1).astype(jnp.float32))

    kernel = _make_kernel(c0, group_pad, w, lanes, k_prefix, mxu_dtype)

    in_specs = [pl.BlockSpec((8, lanes), lambda s: (0, 0)),          # masks
                pl.BlockSpec((1, c0p, lanes), lambda s: (s, 0, 0))]  # x
    flat = [masks, x_pad]
    for wm, bb, aa in zip(w_mats, biases, alphas):
        in_specs.append(pl.BlockSpec(wm.shape, lambda s: (0, 0)))
        in_specs.append(pl.BlockSpec(bb.shape, lambda s: (0, 0)))
        in_specs.append(pl.BlockSpec(aa.shape, lambda s: (0, 0)))
        flat.extend([wm, bb, aa])

    out_fold = pl.pallas_call(
        kernel,
        out_shape=jax.ShapeDtypeStruct((steps, c0, lanes), x_nchw.dtype),
        grid=(steps,),
        in_specs=in_specs,
        out_specs=pl.BlockSpec((1, c0, lanes), lambda s: (s, 0, 0)),
        scratch_shapes=[pltpu.VMEM((k_total, lanes), jnp.float32)],  # tap bank
        compiler_params=pltpu.CompilerParams(dimension_semantics=("parallel",)),
    )(*flat)
    # TODO(synk): for large H*W, tile the grid over rows with a 1-row halo and
    # size row tiles for v7x's 64 MiB VMEM (set vmem_limit_bytes explicitly);
    # also evaluate streaming HW through the MXU (patch^T @ w^T) so each
    # layer's weights stay resident across row/batch tiles.
    return (out_fold.reshape(steps, c0, ips, hw)
            .transpose(0, 2, 1, 3).reshape(n, c0, h, w))


def init_denoising_block_params(key, in_channels, inner_channels, out_channels):
    """Deterministic synthetic parameters matching the PyTorch module shapes.
    nn.PReLU(num_parameters=C) -> per-channel alpha, init 0.25."""
    def conv_params(k, cin, cout):
        kw, kb = jax.random.split(k)
        w = jax.random.normal(kw, (cout, cin, 3, 3), jnp.float32) * 0.1
        b = jax.random.normal(kb, (cout,), jnp.float32) * 0.01
        return w, b

    k0, k1, k2, k3 = jax.random.split(key, 4)
    cins = [in_channels,
            in_channels + inner_channels,
            in_channels + 2 * inner_channels,
            in_channels + 3 * inner_channels]
    couts = [inner_channels, inner_channels, inner_channels, out_channels]
    layers = []
    for k, cin, cout in zip((k0, k1, k2, k3), cins, couts):
        w, b = conv_params(k, cin, cout)
        alpha = jnp.full((cout,), 0.25, jnp.float32)
        layers.append((w, b, alpha))
    return layers


@jax.jit
def denoising_block_forward(x_nchw, params):
    """Mirrors DenoisingBlock.forward (NCHW in / NCHW out)."""
    return fused_denoising_block(x_nchw, params)


def _reference_forward(x_nchw, params):
    """Pure-JAX f32 reference (lax conv) for correctness checking."""
    def conv_prelu(x, w, b, a):
        y = lax.conv_general_dilated(
            x, w, window_strides=(1, 1), padding=((1, 1), (1, 1)),
            dimension_numbers=("NCHW", "OIHW", "NCHW"))
        y = y + b[None, :, None, None]
        return jnp.where(y > 0, y, a[None, :, None, None] * y)

    x = x_nchw
    out0 = conv_prelu(x, *params[0]); cat0 = jnp.concatenate([x, out0], 1)
    out1 = conv_prelu(cat0, *params[1]); cat1 = jnp.concatenate([cat0, out1], 1)
    out2 = conv_prelu(cat1, *params[2]); cat2 = jnp.concatenate([cat1, out2], 1)
    out3 = conv_prelu(cat2, *params[3])
    return out3 + x


if __name__ == "__main__":
    key = jax.random.PRNGKey(0)
    k_x, k_p = jax.random.split(key)

    N, C, H, W = 2, 4, 16, 16          # in_channels == out_channels (residual)
    inner_channels = 8

    x = jax.random.normal(k_x, (N, C, H, W), jnp.float32)
    params = init_denoising_block_params(k_p, C, inner_channels, C)

    out = denoising_block_forward(x, params)
    out = jax.block_until_ready(out)

    ref = _reference_forward(x, params)
    assert out.shape == (N, C, H, W)
    # bf16 MXU operands -> tolerance looser than a pure-f32 comparison.
    assert jnp.allclose(out, ref, atol=5e-2, rtol=5e-2), "mismatch vs reference"

    print("KERNEL_OK")
</pallas_src>

<mosaic_0001>
module attributes {stable_mosaic.version = 11 : i64} {
  func.func @kernel(%arg0: i32, %arg1: memref<8x256xf32, #tpu.memory_space<vmem>>, %arg2: memref<1x8x256xf32, #tpu.memory_space<vmem>>, %arg3: memref<8x72xbf16, #tpu.memory_space<vmem>>, %arg4: memref<8x1xf32, #tpu.memory_space<vmem>>, %arg5: memref<8x1xf32, #tpu.memory_space<vmem>>, %arg6: memref<8x144xbf16, #tpu.memory_space<vmem>>, %arg7: memref<8x1xf32, #tpu.memory_space<vmem>>, %arg8: memref<8x1xf32, #tpu.memory_space<vmem>>, %arg9: memref<8x216xbf16, #tpu.memory_space<vmem>>, %arg10: memref<8x1xf32, #tpu.memory_space<vmem>>, %arg11: memref<8x1xf32, #tpu.memory_space<vmem>>, %arg12: memref<4x288xbf16, #tpu.memory_space<vmem>>, %arg13: memref<4x1xf32, #tpu.memory_space<vmem>>, %arg14: memref<4x1xf32, #tpu.memory_space<vmem>>, %arg15: memref<1x4x256xf32, #tpu.memory_space<vmem>>, %arg16: memref<288x256xf32, #tpu.memory_space<vmem>>) attributes {dimension_semantics = [#tpu.dimension_semantics<parallel>], iteration_bounds = array<i64: 2>, scalar_prefetch = 0 : i64, scratch_operands = 1 : i64, tpu.core_type = #tpu.core_type<tc>, window_params = [{pipeline_mode = #tpu.pipeline_mode<synchronous>, transform_indices = @transform_0, window_bounds = array<i64: 8, 256>}, {transform_indices = @transform_1, window_bounds = array<i64: 1, 8, 256>}, {pipeline_mode = #tpu.pipeline_mode<synchronous>, transform_indices = @transform_2, window_bounds = array<i64: 8, 72>}, {pipeline_mode = #tpu.pipeline_mode<synchronous>, transform_indices = @transform_3, window_bounds = array<i64: 8, 1>}, {pipeline_mode = #tpu.pipeline_mode<synchronous>, transform_indices = @transform_4, window_bounds = array<i64: 8, 1>}, {pipeline_mode = #tpu.pipeline_mode<synchronous>, transform_indices = @transform_5, window_bounds = array<i64: 8, 144>}, {pipeline_mode = #tpu.pipeline_mode<synchronous>, transform_indices = @transform_6, window_bounds = array<i64: 8, 1>}, {pipeline_mode = #tpu.pipeline_mode<synchronous>, transform_indices = @transform_7, window_bounds = array<i64: 8, 1>}, {pipeline_mode = #tpu.pipeline_mode<synchronous>, transform_indices = @transform_8, window_bounds = array<i64: 8, 216>}, {pipeline_mode = #tpu.pipeline_mode<synchronous>, transform_indices = @transform_9, window_bounds = array<i64: 8, 1>}, {pipeline_mode = #tpu.pipeline_mode<synchronous>, transform_indices = @transform_10, window_bounds = array<i64: 8, 1>}, {pipeline_mode = #tpu.pipeline_mode<synchronous>, transform_indices = @transform_11, window_bounds = array<i64: 4, 288>}, {pipeline_mode = #tpu.pipeline_mode<synchronous>, transform_indices = @transform_12, window_bounds = array<i64: 4, 1>}, {pipeline_mode = #tpu.pipeline_mode<synchronous>, transform_indices = @transform_13, window_bounds = array<i64: 4, 1>}, {transform_indices = @transform_14, window_bounds = array<i64: 1, 4, 256>}]} {
    %c0 = arith.constant 0 : index
    %c0_0 = arith.constant 0 : index
    %0 = vector.load %arg1[%c0, %c0_0] : memref<8x256xf32, #tpu.memory_space<vmem>>, vector<8x256xf32>
    %1 = vector.extract_strided_slice %0 {offsets = [0, 0], sizes = [1, 256], strides = [1, 1]} : vector<8x256xf32> to vector<1x256xf32>
    %2 = vector.shape_cast %1 : vector<1x256xf32> to vector<1x256xf32>
    %3 = vector.broadcast %2 : vector<1x256xf32> to vector<8x256xf32>
    %4 = vector.extract_strided_slice %0 {offsets = [1, 0], sizes = [1, 256], strides = [1, 1]} : vector<8x256xf32> to vector<1x256xf32>
    %5 = vector.shape_cast %4 : vector<1x256xf32> to vector<1x256xf32>
    %6 = vector.broadcast %5 : vector<1x256xf32> to vector<8x256xf32>
    %7 = vector.extract_strided_slice %0 {offsets = [2, 0], sizes = [1, 256], strides = [1, 1]} : vector<8x256xf32> to vector<1x256xf32>
    %8 = vector.shape_cast %7 : vector<1x256xf32> to vector<1x256xf32>
    %9 = vector.broadcast %8 : vector<1x256xf32> to vector<8x256xf32>
    %10 = vector.extract_strided_slice %0 {offsets = [3, 0], sizes = [1, 256], strides = [1, 1]} : vector<8x256xf32> to vector<1x256xf32>
    %11 = vector.shape_cast %10 : vector<1x256xf32> to vector<1x256xf32>
    %12 = vector.broadcast %11 : vector<1x256xf32> to vector<8x256xf32>
    %13 = vector.extract_strided_slice %0 {offsets = [4, 0], sizes = [1, 256], strides = [1, 1]} : vector<8x256xf32> to vector<1x256xf32>
    %14 = vector.shape_cast %13 : vector<1x256xf32> to vector<1x256xf32>
    %15 = vector.broadcast %14 : vector<1x256xf32> to vector<8x256xf32>
    %16 = vector.extract_strided_slice %0 {offsets = [5, 0], sizes = [1, 256], strides = [1, 1]} : vector<8x256xf32> to vector<1x256xf32>
    %17 = vector.shape_cast %16 : vector<1x256xf32> to vector<1x256xf32>
    %18 = vector.broadcast %17 : vector<1x256xf32> to vector<8x256xf32>
    %19 = vector.extract_strided_slice %0 {offsets = [6, 0], sizes = [1, 256], strides = [1, 1]} : vector<8x256xf32> to vector<1x256xf32>
    %20 = vector.shape_cast %19 : vector<1x256xf32> to vector<1x256xf32>
    %21 = vector.broadcast %20 : vector<1x256xf32> to vector<8x256xf32>
    %22 = vector.extract_strided_slice %0 {offsets = [7, 0], sizes = [1, 256], strides = [1, 1]} : vector<8x256xf32> to vector<1x256xf32>
    %23 = vector.shape_cast %22 : vector<1x256xf32> to vector<1x256xf32>
    %24 = vector.broadcast %23 : vector<1x256xf32> to vector<8x256xf32>
    %c0_1 = arith.constant 0 : index
    %c0_2 = arith.constant 0 : index
    %c0_3 = arith.constant 0 : index
    %25 = vector.load %arg2[%c0_1, %c0_2, %c0_3] : memref<1x8x256xf32, #tpu.memory_space<vmem>>, vector<1x8x256xf32>
    %26 = vector.shape_cast %25 : vector<1x8x256xf32> to vector<8x256xf32>
    %c17_i32 = arith.constant 17 : i32
    %27 = tpu.dynamic_rotate %26 by %c17_i32 dim 1 : vector<8x256xf32>, i32 -> vector<8x256xf32>
    %28 = arith.mulf %27, %3 : vector<8x256xf32>
    %c0_4 = arith.constant 0 : index
    %c0_5 = arith.constant 0 : index
    %29 = vector.load %arg16[%c0_4, %c0_5] : memref<288x256xf32, #tpu.memory_space<vmem>>, vector<8x256xf32>
    tpu.vector_store %arg16[%c0_4, %c0_5], %28 {strides = array<i32>} : memref<288x256xf32, #tpu.memory_space<vmem>>, vector<8x256xf32>,
    %c16_i32 = arith.constant 16 : i32
    %30 = tpu.dynamic_rotate %26 by %c16_i32 dim 1 : vector<8x256xf32>, i32 -> vector<8x256xf32>
    %31 = arith.mulf %30, %6 : vector<8x256xf32>
    %c8 = arith.constant 8 : index
    %c0_6 = arith.constant 0 : index
    %32 = vector.load %arg16[%c8, %c0_6] : memref<288x256xf32, #tpu.memory_space<vmem>>, vector<8x256xf32>
    tpu.vector_store %arg16[%c8, %c0_6], %31 {strides = array<i32>} : memref<288x256xf32, #tpu.memory_space<vmem>>, vector<8x256xf32>,
    %c15_i32 = arith.constant 15 : i32
    %33 = tpu.dynamic_rotate %26 by %c15_i32 dim 1 : vector<8x256xf32>, i32 -> vector<8x256xf32>
    %34 = arith.mulf %33, %9 : vector<8x256xf32>
    %c16 = arith.constant 16 : index
    %c0_7 = arith.constant 0 : index
    %35 = vector.load %arg16[%c16, %c0_7] : memref<288x256xf32, #tpu.memory_space<vmem>>, vector<8x256xf32>
    tpu.vector_store %arg16[%c16, %c0_7], %34 {strides = array<i32>} : memref<288x256xf32, #tpu.memory_space<vmem>>, vector<8x256xf32>,
    %c1_i32 = arith.constant 1 : i32
    %36 = tpu.dynamic_rotate %26 by %c1_i32 dim 1 : vector<8x256xf32>, i32 -> vector<8x256xf32>
    %37 = arith.mulf %36, %12 : vector<8x256xf32>
    %c24 = arith.constant 24 : index
    %c0_8 = arith.constant 0 : index
    %38 = vector.load %arg16[%c24, %c0_8] : memref<288x256xf32, #tpu.memory_space<vmem>>, vector<8x256xf32>
    tpu.vector_store %arg16[%c24, %c0_8], %37 {strides = array<i32>} : memref<288x256xf32, #tpu.memory_space<vmem>>, vector<8x256xf32>,
    %c32 = arith.constant 32 : index
    %c0_9 = arith.constant 0 : index
    %39 = vector.load %arg16[%c32, %c0_9] : memref<288x256xf32, #tpu.memory_space<vmem>>, vector<8x256xf32>
    tpu.vector_store %arg16[%c32, %c0_9], %26 {strides = array<i32>} : memref<288x256xf32, #tpu.memory_space<vmem>>, vector<8x256xf32>,
    %c255_i32 = arith.constant 255 : i32
    %40 = tpu.dynamic_rotate %26 by %c255_i32 dim 1 : vector<8x256xf32>, i32 -> vector<8x256xf32>
    %41 = arith.mulf %40, %15 : vector<8x256xf32>
    %c40 = arith.constant 40 : index
    %c0_10 = arith.constant 0 : index
    %42 = vector.load %arg16[%c40, %c0_10] : memref<288x256xf32, #tpu.memory_space<vmem>>, vector<8x256xf32>
    tpu.vector_store %arg16[%c40, %c0_10], %41 {strides = array<i32>} : memref<288x256xf32, #tpu.memory_space<vmem>>, vector<8x256xf32>,
    %c241_i32 = arith.constant 241 : i32
    %43 = tpu.dynamic_rotate %26 by %c241_i32 dim 1 : vector<8x256xf32>, i32 -> vector<8x256xf32>
    %44 = arith.mulf %43, %18 : vector<8x256xf32>
    %c48 = arith.constant 48 : index
    %c0_11 = arith.constant 0 : index
    %45 = vector.load %arg16[%c48, %c0_11] : memref<288x256xf32, #tpu.memory_space<vmem>>, vector<8x256xf32>
    tpu.vector_store %arg16[%c48, %c0_11], %44 {strides = array<i32>} : memref<288x256xf32, #tpu.memory_space<vmem>>, vector<8x256xf32>,
    %c240_i32 = arith.constant 240 : i32
    %46 = tpu.dynamic_rotate %26 by %c240_i32 dim 1 : vector<8x256xf32>, i32 -> vector<8x256xf32>
    %47 = arith.mulf %46, %21 : vector<8x256xf32>
    %c56 = arith.constant 56 : index
    %c0_12 = arith.constant 0 : index
    %48 = vector.load %arg16[%c56, %c0_12] : memref<288x256xf32, #tpu.memory_space<vmem>>, vector<8x256xf32>
    tpu.vector_store %arg16[%c56, %c0_12], %47 {strides = array<i32>} : memref<288x256xf32, #tpu.memory_space<vmem>>, vector<8x256xf32>,
    %c239_i32 = arith.constant 239 : i32
    %49 = tpu.dynamic_rotate %26 by %c239_i32 dim 1 : vector<8x256xf32>, i32 -> vector<8x256xf32>
    %50 = arith.mulf %49, %24 : vector<8x256xf32>
    %c64 = arith.constant 64 : index
    %c0_13 = arith.constant 0 : index
    %51 = vector.load %arg16[%c64, %c0_13] : memref<288x256xf32, #tpu.memory_space<vmem>>, vector<8x256xf32>
    tpu.vector_store %arg16[%c64, %c0_13], %50 {strides = array<i32>} : memref<288x256xf32, #tpu.memory_space<vmem>>, vector<8x256xf32>,
    %c0_14 = arith.constant 0 : index
    %c0_15 = arith.constant 0 : index
    %52 = vector.load %arg16[%c0_14, %c0_15] : memref<288x256xf32, #tpu.memory_space<vmem>>, vector<72x256xf32>
    %53 = arith.truncf %52 : vector<72x256xf32> to vector<72x256xbf16>
    %c0_16 = arith.constant 0 : index
    %c0_17 = arith.constant 0 : index
    %54 = vector.load %arg3[%c0_16, %c0_17] : memref<8x72xbf16, #tpu.memory_space<vmem>>, vector<8x72xbf16>
    %cst = arith.constant dense<0.000000e+00> : vector<8x256xf32>
    %55 = tpu.matmul %54, %53, %cst {dimension_numbers = #tpu.dot_dimension_numbers<[1], [0], [0], [1], [0, 0, 1, 1], [], []>} : vector<8x72xbf16>, vector<72x256xbf16>, vector<8x256xf32> -> vector<8x256xf32>
    %c0_18 = arith.constant 0 : index
    %c0_19 = arith.constant 0 : index
    %56 = vector.load %arg4[%c0_18, %c0_19] : memref<8x1xf32, #tpu.memory_space<vmem>>, vector<8x1xf32>
    %57 = vector.broadcast %56 : vector<8x1xf32> to vector<8x256xf32>
    %58 = arith.addf %55, %57 : vector<8x256xf32>
    %cst_20 = arith.constant 0.000000e+00 : f32
    %59 = vector.broadcast %cst_20 : f32 to vector<8x256xf32>
    %60 = arith.cmpf ogt, %58, %59 : vector<8x256xf32>
    %c0_21 = arith.constant 0 : index
    %c0_22 = arith.constant 0 : index
    %61 = vector.load %arg5[%c0_21, %c0_22] : memref<8x1xf32, #tpu.memory_space<vmem>>, vector<8x1xf32>
    %62 = vector.broadcast %61 : vector<8x1xf32> to vector<8x256xf32>
    %63 = arith.mulf %62, %58 : vector<8x256xf32>
    %64 = arith.select %60, %58, %63 : vector<8x256xi1>, vector<8x256xf32>
    %c17_i32_23 = arith.constant 17 : i32
    %65 = tpu.dynamic_rotate %64 by %c17_i32_23 dim 1 : vector<8x256xf32>, i32 -> vector<8x256xf32>
    %66 = arith.mulf %65, %3 : vector<8x256xf32>
    %c72 = arith.constant 72 : index
    %c0_24 = arith.constant 0 : index
    %67 = vector.load %arg16[%c72, %c0_24] : memref<288x256xf32, #tpu.memory_space<vmem>>, vector<8x256xf32>
    tpu.vector_store %arg16[%c72, %c0_24], %66 {strides = array<i32>} : memref<288x256xf32, #tpu.memory_space<vmem>>, vector<8x256xf32>,
    %c16_i32_25 = arith.constant 16 : i32
    %68 = tpu.dynamic_rotate %64 by %c16_i32_25 dim 1 : vector<8x256xf32>, i32 -> vector<8x256xf32>
    %69 = arith.mulf %68, %6 : vector<8x256xf32>
    %c80 = arith.constant 80 : index
    %c0_26 = arith.constant 0 : index
    %70 = vector.load %arg16[%c80, %c0_26] : memref<288x256xf32, #tpu.memory_space<vmem>>, vector<8x256xf32>
    tpu.vector_store %arg16[%c80, %c0_26], %69 {strides = array<i32>} : memref<288x256xf32, #tpu.memory_space<vmem>>, vector<8x256xf32>,
    %c15_i32_27 = arith.constant 15 : i32
    %71 = tpu.dynamic_rotate %64 by %c15_i32_27 dim 1 : vector<8x256xf32>, i32 -> vector<8x256xf32>
    %72 = arith.mulf %71, %9 : vector<8x256xf32>
    %c88 = arith.constant 88 : index
    %c0_28 = arith.constant 0 : index
    %73 = vector.load %arg16[%c88, %c0_28] : memref<288x256xf32, #tpu.memory_space<vmem>>, vector<8x256xf32>
    tpu.vector_store %arg16[%c88, %c0_28], %72 {strides = array<i32>} : memref<288x256xf32, #tpu.memory_space<vmem>>, vector<8x256xf32>,
    %c1_i32_29 = arith.constant 1 : i32
    %74 = tpu.dynamic_rotate %64 by %c1_i32_29 dim 1 : vector<8x256xf32>, i32 -> vector<8x256xf32>
    %75 = arith.mulf %74, %12 : vector<8x256xf32>
    %c96 = arith.constant 96 : index
    %c0_30 = arith.constant 0 : index
    %76 = vector.load %arg16[%c96, %c0_30] : memref<288x256xf32, #tpu.memory_space<vmem>>, vector<8x256xf32>
    tpu.vector_store %arg16[%c96, %c0_30], %75 {strides = array<i32>} : memref<288x256xf32, #tpu.memory_space<vmem>>, vector<8x256xf32>,
    %c104 = arith.constant 104 : index
    %c0_31 = arith.constant 0 : index
    %77 = vector.load %arg16[%c104, %c0_31] : memref<288x256xf32, #tpu.memory_space<vmem>>, vector<8x256xf32>
    tpu.vector_store %arg16[%c104, %c0_31], %64 {strides = array<i32>} : memref<288x256xf32, #tpu.memory_space<vmem>>, vector<8x256xf32>,
    %c255_i32_32 = arith.constant 255 : i32
    %78 = tpu.dynamic_rotate %64 by %c255_i32_32 dim 1 : vector<8x256xf32>, i32 -> vector<8x256xf32>
    %79 = arith.mulf %78, %15 : vector<8x256xf32>
    %c112 = arith.constant 112 : index
    %c0_33 = arith.constant 0 : index
    %80 = vector.load %arg16[%c112, %c0_33] : memref<288x256xf32, #tpu.memory_space<vmem>>, vector<8x256xf32>
    tpu.vector_store %arg16[%c112, %c0_33], %79 {strides = array<i32>} : memref<288x256xf32, #tpu.memory_space<vmem>>, vector<8x256xf32>,
    %c241_i32_34 = arith.constant 241 : i32
    %81 = tpu.dynamic_rotate %64 by %c241_i32_34 dim 1 : vector<8x256xf32>, i32 -> vector<8x256xf32>
    %82 = arith.mulf %81, %18 : vector<8x256xf32>
    %c120 = arith.constant 120 : index
    %c0_35 = arith.constant 0 : index
    %83 = vector.load %arg16[%c120, %c0_35] : memref<288x256xf32, #tpu.memory_space<vmem>>, vector<8x256xf32>
    tpu.vector_store %arg16[%c120, %c0_35], %82 {strides = array<i32>} : memref<288x256xf32, #tpu.memory_space<vmem>>, vector<8x256xf32>,
    %c240_i32_36 = arith.constant 240 : i32
    %84 = tpu.dynamic_rotate %64 by %c240_i32_36 dim 1 : vector<8x256xf32>, i32 -> vector<8x256xf32>
    %85 = arith.mulf %84, %21 : vector<8x256xf32>
    %c128 = arith.constant 128 : index
    %c0_37 = arith.constant 0 : index
    %86 = vector.load %arg16[%c128, %c0_37] : memref<288x256xf32, #tpu.memory_space<vmem>>, vector<8x256xf32>
    tpu.vector_store %arg16[%c128, %c0_37], %85 {strides = array<i32>} : memref<288x256xf32, #tpu.memory_space<vmem>>, vector<8x256xf32>,
    %c239_i32_38 = arith.constant 239 : i32
    %87 = tpu.dynamic_rotate %64 by %c239_i32_38 dim 1 : vector<8x256xf32>, i32 -> vector<8x256xf32>
    %88 = arith.mulf %87, %24 : vector<8x256xf32>
    %c136 = arith.constant 136 : index
    %c0_39 = arith.constant 0 : index
    %89 = vector.load %arg16[%c136, %c0_39] : memref<288x256xf32, #tpu.memory_space<vmem>>, vector<8x256xf32>
    tpu.vector_store %arg16[%c136, %c0_39], %88 {strides = array<i32>} : memref<288x256xf32, #tpu.memory_space<vmem>>, vector<8x256xf32>,
    %c0_40 = arith.constant 0 : index
    %c0_41 = arith.constant 0 : index
    %90 = vector.load %arg16[%c0_40, %c0_41] : memref<288x256xf32, #tpu.memory_space<vmem>>, vector<144x256xf32>
    %91 = arith.truncf %90 : vector<144x256xf32> to vector<144x256xbf16>
    %c0_42 = arith.constant 0 : index
    %c0_43 = arith.constant 0 : index
    %92 = vector.load %arg6[%c0_42, %c0_43] : memref<8x144xbf16, #tpu.memory_space<vmem>>, vector<8x144xbf16>
    %cst_44 = arith.constant dense<0.000000e+00> : vector<8x256xf32>
    %93 = tpu.matmul %92, %91, %cst_44 {dimension_numbers = #tpu.dot_dimension_numbers<[1], [0], [0], [1], [0, 0, 1, 1], [], []>} : vector<8x144xbf16>, vector<144x256xbf16>, vector<8x256xf32> -> vector<8x256xf32>
    %c0_45 = arith.constant 0 : index
    %c0_46 = arith.constant 0 : index
    %94 = vector.load %arg7[%c0_45, %c0_46] : memref<8x1xf32, #tpu.memory_space<vmem>>, vector<8x1xf32>
    %95 = vector.broadcast %94 : vector<8x1xf32> to vector<8x256xf32>
    %96 = arith.addf %93, %95 : vector<8x256xf32>
    %cst_47 = arith.constant 0.000000e+00 : f32
    %97 = vector.broadcast %cst_47 : f32 to vector<8x256xf32>
    %98 = arith.cmpf ogt, %96, %97 : vector<8x256xf32>
    %c0_48 = arith.constant 0 : index
    %c0_49 = arith.constant 0 : index
    %99 = vector.load %arg8[%c0_48, %c0_49] : memref<8x1xf32, #tpu.memory_space<vmem>>, vector<8x1xf32>
    %100 = vector.broadcast %99 : vector<8x1xf32> to vector<8x256xf32>
    %101 = arith.mulf %100, %96 : vector<8x256xf32>
    %102 = arith.select %98, %96, %101 : vector<8x256xi1>, vector<8x256xf32>
    %c17_i32_50 = arith.constant 17 : i32
    %103 = tpu.dynamic_rotate %102 by %c17_i32_50 dim 1 : vector<8x256xf32>, i32 -> vector<8x256xf32>
    %104 = arith.mulf %103, %3 : vector<8x256xf32>
    %c144 = arith.constant 144 : index
    %c0_51 = arith.constant 0 : index
    %105 = vector.load %arg16[%c144, %c0_51] : memref<288x256xf32, #tpu.memory_space<vmem>>, vector<8x256xf32>
    tpu.vector_store %arg16[%c144, %c0_51], %104 {strides = array<i32>} : memref<288x256xf32, #tpu.memory_space<vmem>>, vector<8x256xf32>,
    %c16_i32_52 = arith.constant 16 : i32
    %106 = tpu.dynamic_rotate %102 by %c16_i32_52 dim 1 : vector<8x256xf32>, i32 -> vector<8x256xf32>
    %107 = arith.mulf %106, %6 : vector<8x256xf32>
    %c152 = arith.constant 152 : index
    %c0_53 = arith.constant 0 : index
    %108 = vector.load %arg16[%c152, %c0_53] : memref<288x256xf32, #tpu.memory_space<vmem>>, vector<8x256xf32>
    tpu.vector_store %arg16[%c152, %c0_53], %107 {strides = array<i32>} : memref<288x256xf32, #tpu.memory_space<vmem>>, vector<8x256xf32>,
    %c15_i32_54 = arith.constant 15 : i32
    %109 = tpu.dynamic_rotate %102 by %c15_i32_54 dim 1 : vector<8x256xf32>, i32 -> vector<8x256xf32>
    %110 = arith.mulf %109, %9 : vector<8x256xf32>
    %c160 = arith.constant 160 : index
    %c0_55 = arith.constant 0 : index
    %111 = vector.load %arg16[%c160, %c0_55] : memref<288x256xf32, #tpu.memory_space<vmem>>, vector<8x256xf32>
    tpu.vector_store %arg16[%c160, %c0_55], %110 {strides = array<i32>} : memref<288x256xf32, #tpu.memory_space<vmem>>, vector<8x256xf32>,
    %c1_i32_56 = arith.constant 1 : i32
    %112 = tpu.dynamic_rotate %102 by %c1_i32_56 dim 1 : vector<8x256xf32>, i32 -> vector<8x256xf32>
    %113 = arith.mulf %112, %12 : vector<8x256xf32>
    %c168 = arith.constant 168 : index
    %c0_57 = arith.constant 0 : index
    %114 = vector.load %arg16[%c168, %c0_57] : memref<288x256xf32, #tpu.memory_space<vmem>>, vector<8x256xf32>
    tpu.vector_store %arg16[%c168, %c0_57], %113 {strides = array<i32>} : memref<288x256xf32, #tpu.memory_space<vmem>>, vector<8x256xf32>,
    %c176 = arith.constant 176 : index
    %c0_58 = arith.constant 0 : index
    %115 = vector.load %arg16[%c176, %c0_58] : memref<288x256xf32, #tpu.memory_space<vmem>>, vector<8x256xf32>
    tpu.vector_store %arg16[%c176, %c0_58], %102 {strides = array<i32>} : memref<288x256xf32, #tpu.memory_space<vmem>>, vector<8x256xf32>,
    %c255_i32_59 = arith.constant 255 : i32
    %116 = tpu.dynamic_rotate %102 by %c255_i32_59 dim 1 : vector<8x256xf32>, i32 -> vector<8x256xf32>
    %117 = arith.mulf %116, %15 : vector<8x256xf32>
    %c184 = arith.constant 184 : index
    %c0_60 = arith.constant 0 : index
    %118 = vector.load %arg16[%c184, %c0_60] : memref<288x256xf32, #tpu.memory_space<vmem>>, vector<8x256xf32>
    tpu.vector_store %arg16[%c184, %c0_60], %117 {strides = array<i32>} : memref<288x256xf32, #tpu.memory_space<vmem>>, vector<8x256xf32>,
    %c241_i32_61 = arith.constant 241 : i32
    %119 = tpu.dynamic_rotate %102 by %c241_i32_61 dim 1 : vector<8x256xf32>, i32 -> vector<8x256xf32>
    %120 = arith.mulf %119, %18 : vector<8x256xf32>
    %c192 = arith.constant 192 : index
    %c0_62 = arith.constant 0 : index
    %121 = vector.load %arg16[%c192, %c0_62] : memref<288x256xf32, #tpu.memory_space<vmem>>, vector<8x256xf32>
    tpu.vector_store %arg16[%c192, %c0_62], %120 {strides = array<i32>} : memref<288x256xf32, #tpu.memory_space<vmem>>, vector<8x256xf32>,
    %c240_i32_63 = arith.constant 240 : i32
    %122 = tpu.dynamic_rotate %102 by %c240_i32_63 dim 1 : vector<8x256xf32>, i32 -> vector<8x256xf32>
    %123 = arith.mulf %122, %21 : vector<8x256xf32>
    %c200 = arith.constant 200 : index
    %c0_64 = arith.constant 0 : index
    %124 = vector.load %arg16[%c200, %c0_64] : memref<288x256xf32, #tpu.memory_space<vmem>>, vector<8x256xf32>
    tpu.vector_store %arg16[%c200, %c0_64], %123 {strides = array<i32>} : memref<288x256xf32, #tpu.memory_space<vmem>>, vector<8x256xf32>,
    %c239_i32_65 = arith.constant 239 : i32
    %125 = tpu.dynamic_rotate %102 by %c239_i32_65 dim 1 : vector<8x256xf32>, i32 -> vector<8x256xf32>
    %126 = arith.mulf %125, %24 : vector<8x256xf32>
    %c208 = arith.constant 208 : index
    %c0_66 = arith.constant 0 : index
    %127 = vector.load %arg16[%c208, %c0_66] : memref<288x256xf32, #tpu.memory_space<vmem>>, vector<8x256xf32>
    tpu.vector_store %arg16[%c208, %c0_66], %126 {strides = array<i32>} : memref<288x256xf32, #tpu.memory_space<vmem>>, vector<8x256xf32>,
    %c0_67 = arith.constant 0 : index
    %c0_68 = arith.constant 0 : index
    %128 = vector.load %arg16[%c0_67, %c0_68] : memref<288x256xf32, #tpu.memory_space<vmem>>, vector<216x256xf32>
    %129 = arith.truncf %128 : vector<216x256xf32> to vector<216x256xbf16>
    %c0_69 = arith.constant 0 : index
    %c0_70 = arith.constant 0 : index
    %130 = vector.load %arg9[%c0_69, %c0_70] : memref<8x216xbf16, #tpu.memory_space<vmem>>, vector<8x216xbf16>
    %cst_71 = arith.constant dense<0.000000e+00> : vector<8x256xf32>
    %131 = tpu.matmul %130, %129, %cst_71 {dimension_numbers = #tpu.dot_dimension_numbers<[1], [0], [0], [1], [0, 0, 1, 1], [], []>} : vector<8x216xbf16>, vector<216x256xbf16>, vector<8x256xf32> -> vector<8x256xf32>
    %c0_72 = arith.constant 0 : index
    %c0_73 = arith.constant 0 : index
    %132 = vector.load %arg10[%c0_72, %c0_73] : memref<8x1xf32, #tpu.memory_space<vmem>>, vector<8x1xf32>
    %133 = vector.broadcast %132 : vector<8x1xf32> to vector<8x256xf32>
    %134 = arith.addf %131, %133 : vector<8x256xf32>
    %cst_74 = arith.constant 0.000000e+00 : f32
    %135 = vector.broadcast %cst_74 : f32 to vector<8x256xf32>
    %136 = arith.cmpf ogt, %134, %135 : vector<8x256xf32>
    %c0_75 = arith.constant 0 : index
    %c0_76 = arith.constant 0 : index
    %137 = vector.load %arg11[%c0_75, %c0_76] : memref<8x1xf32, #tpu.memory_space<vmem>>, vector<8x1xf32>
    %138 = vector.broadcast %137 : vector<8x1xf32> to vector<8x256xf32>
    %139 = arith.mulf %138, %134 : vector<8x256xf32>
    %140 = arith.select %136, %134, %139 : vector<8x256xi1>, vector<8x256xf32>
    %c17_i32_77 = arith.constant 17 : i32
    %141 = tpu.dynamic_rotate %140 by %c17_i32_77 dim 1 : vector<8x256xf32>, i32 -> vector<8x256xf32>
    %142 = arith.mulf %141, %3 : vector<8x256xf32>
    %c216 = arith.constant 216 : index
    %c0_78 = arith.constant 0 : index
    %143 = vector.load %arg16[%c216, %c0_78] : memref<288x256xf32, #tpu.memory_space<vmem>>, vector<8x256xf32>
    tpu.vector_store %arg16[%c216, %c0_78], %142 {strides = array<i32>} : memref<288x256xf32, #tpu.memory_space<vmem>>, vector<8x256xf32>,
    %c16_i32_79 = arith.constant 16 : i32
    %144 = tpu.dynamic_rotate %140 by %c16_i32_79 dim 1 : vector<8x256xf32>, i32 -> vector<8x256xf32>
    %145 = arith.mulf %144, %6 : vector<8x256xf32>
    %c224 = arith.constant 224 : index
    %c0_80 = arith.constant 0 : index
    %146 = vector.load %arg16[%c224, %c0_80] : memref<288x256xf32, #tpu.memory_space<vmem>>, vector<8x256xf32>
    tpu.vector_store %arg16[%c224, %c0_80], %145 {strides = array<i32>} : memref<288x256xf32, #tpu.memory_space<vmem>>, vector<8x256xf32>,
    %c15_i32_81 = arith.constant 15 : i32
    %147 = tpu.dynamic_rotate %140 by %c15_i32_81 dim 1 : vector<8x256xf32>, i32 -> vector<8x256xf32>
    %148 = arith.mulf %147, %9 : vector<8x256xf32>
    %c232 = arith.constant 232 : index
    %c0_82 = arith.constant 0 : index
    %149 = vector.load %arg16[%c232, %c0_82] : memref<288x256xf32, #tpu.memory_space<vmem>>, vector<8x256xf32>
    tpu.vector_store %arg16[%c232, %c0_82], %148 {strides = array<i32>} : memref<288x256xf32, #tpu.memory_space<vmem>>, vector<8x256xf32>,
    %c1_i32_83 = arith.constant 1 : i32
    %150 = tpu.dynamic_rotate %140 by %c1_i32_83 dim 1 : vector<8x256xf32>, i32 -> vector<8x256xf32>
    %151 = arith.mulf %150, %12 : vector<8x256xf32>
    %c240 = arith.constant 240 : index
    %c0_84 = arith.constant 0 : index
    %152 = vector.load %arg16[%c240, %c0_84] : memref<288x256xf32, #tpu.memory_space<vmem>>, vector<8x256xf32>
    tpu.vector_store %arg16[%c240, %c0_84], %151 {strides = array<i32>} : memref<288x256xf32, #tpu.memory_space<vmem>>, vector<8x256xf32>,
    %c248 = arith.constant 248 : index
    %c0_85 = arith.constant 0 : index
    %153 = vector.load %arg16[%c248, %c0_85] : memref<288x256xf32, #tpu.memory_space<vmem>>, vector<8x256xf32>
    tpu.vector_store %arg16[%c248, %c0_85], %140 {strides = array<i32>} : memref<288x256xf32, #tpu.memory_space<vmem>>, vector<8x256xf32>,
    %c255_i32_86 = arith.constant 255 : i32
    %154 = tpu.dynamic_rotate %140 by %c255_i32_86 dim 1 : vector<8x256xf32>, i32 -> vector<8x256xf32>
    %155 = arith.mulf %154, %15 : vector<8x256xf32>
    %c256 = arith.constant 256 : index
    %c0_87 = arith.constant 0 : index
    %156 = vector.load %arg16[%c256, %c0_87] : memref<288x256xf32, #tpu.memory_space<vmem>>, vector<8x256xf32>
    tpu.vector_store %arg16[%c256, %c0_87], %155 {strides = array<i32>} : memref<288x256xf32, #tpu.memory_space<vmem>>, vector<8x256xf32>,
    %c241_i32_88 = arith.constant 241 : i32
    %157 = tpu.dynamic_rotate %140 by %c241_i32_88 dim 1 : vector<8x256xf32>, i32 -> vector<8x256xf32>
    %158 = arith.mulf %157, %18 : vector<8x256xf32>
    %c264 = arith.constant 264 : index
    %c0_89 = arith.constant 0 : index
    %159 = vector.load %arg16[%c264, %c0_89] : memref<288x256xf32, #tpu.memory_space<vmem>>, vector<8x256xf32>
    tpu.vector_store %arg16[%c264, %c0_89], %158 {strides = array<i32>} : memref<288x256xf32, #tpu.memory_space<vmem>>, vector<8x256xf32>,
    %c240_i32_90 = arith.constant 240 : i32
    %160 = tpu.dynamic_rotate %140 by %c240_i32_90 dim 1 : vector<8x256xf32>, i32 -> vector<8x256xf32>
    %161 = arith.mulf %160, %21 : vector<8x256xf32>
    %c272 = arith.constant 272 : index
    %c0_91 = arith.constant 0 : index
    %162 = vector.load %arg16[%c272, %c0_91] : memref<288x256xf32, #tpu.memory_space<vmem>>, vector<8x256xf32>
    tpu.vector_store %arg16[%c272, %c0_91], %161 {strides = array<i32>} : memref<288x256xf32, #tpu.memory_space<vmem>>, vector<8x256xf32>,
    %c239_i32_92 = arith.constant 239 : i32
    %163 = tpu.dynamic_rotate %140 by %c239_i32_92 dim 1 : vector<8x256xf32>, i32 -> vector<8x256xf32>
    %164 = arith.mulf %163, %24 : vector<8x256xf32>
    %c280 = arith.constant 280 : index
    %c0_93 = arith.constant 0 : index
    %165 = vector.load %arg16[%c280, %c0_93] : memref<288x256xf32, #tpu.memory_space<vmem>>, vector<8x256xf32>
    tpu.vector_store %arg16[%c280, %c0_93], %164 {strides = array<i32>} : memref<288x256xf32, #tpu.memory_space<vmem>>, vector<8x256xf32>,
    %c0_94 = arith.constant 0 : index
    %c0_95 = arith.constant 0 : index
    %166 = vector.load %arg16[%c0_94, %c0_95] : memref<288x256xf32, #tpu.memory_space<vmem>>, vector<288x256xf32>
    %167 = arith.truncf %166 : vector<288x256xf32> to vector<288x256xbf16>
    %c0_96 = arith.constant 0 : index
    %c0_97 = arith.constant 0 : index
    %168 = vector.load %arg12[%c0_96, %c0_97] : memref<4x288xbf16, #tpu.memory_space<vmem>>, vector<4x288xbf16>
    %cst_98 = arith.constant dense<0.000000e+00> : vector<4x256xf32>
    %169 = tpu.matmul %168, %167, %cst_98 {dimension_numbers = #tpu.dot_dimension_numbers<[1], [0], [0], [1], [0, 0, 1, 1], [], []>} : vector<4x288xbf16>, vector<288x256xbf16>, vector<4x256xf32> -> vector<4x256xf32>
    %c0_99 = arith.constant 0 : index
    %c0_100 = arith.constant 0 : index
    %170 = vector.load %arg13[%c0_99, %c0_100] : memref<4x1xf32, #tpu.memory_space<vmem>>, vector<4x1xf32>
    %171 = vector.broadcast %170 : vector<4x1xf32> to vector<4x256xf32>
    %172 = arith.addf %169, %171 : vector<4x256xf32>
    %cst_101 = arith.constant 0.000000e+00 : f32
    %173 = vector.broadcast %cst_101 : f32 to vector<4x256xf32>
    %174 = arith.cmpf ogt, %172, %173 : vector<4x256xf32>
    %c0_102 = arith.constant 0 : index
    %c0_103 = arith.constant 0 : index
    %175 = vector.load %arg14[%c0_102, %c0_103] : memref<4x1xf32, #tpu.memory_space<vmem>>, vector<4x1xf32>
    %176 = vector.broadcast %175 : vector<4x1xf32> to vector<4x256xf32>
    %177 = arith.mulf %176, %172 : vector<4x256xf32>
    %178 = arith.select %174, %172, %177 : vector<4x256xi1>, vector<4x256xf32>
    %179 = vector.extract_strided_slice %26 {offsets = [0, 0], sizes = [4, 256], strides = [1, 1]} : vector<8x256xf32> to vector<4x256xf32>
    %180 = arith.addf %178, %179 : vector<4x256xf32>
    %c0_104 = arith.constant 0 : index
    %c0_105 = arith.constant 0 : index
    %c0_106 = arith.constant 0 : index
    %181 = vector.load %arg15[%c0_104, %c0_105, %c0_106] : memref<1x4x256xf32, #tpu.memory_space<vmem>>, vector<1x4x256xf32>
    %182 = vector.shape_cast %181 : vector<1x4x256xf32> to vector<4x256xf32>
    %183 = vector.shape_cast %180 : vector<4x256xf32> to vector<1x4x256xf32>
    tpu.vector_store %arg15[%c0_104, %c0_105, %c0_106], %183 {strides = array<i32>} : memref<1x4x256xf32, #tpu.memory_space<vmem>>, vector<1x4x256xf32>,
    return
  }
  func.func @transform_0(%arg0: i32) -> (i32, i32) {
    %c0_i32 = arith.constant 0 : i32
    %c0_i32_0 = arith.constant 0 : i32
    %c0_i32_1 = arith.constant 0 : i32
    return %c0_i32, %c0_i32_0 : i32, i32
  }
  func.func @transform_1(%arg0: i32) -> (i32, i32, i32) {
    %c0_i32 = arith.constant 0 : i32
    %c0_i32_0 = arith.constant 0 : i32
    %c0_i32_1 = arith.constant 0 : i32
    return %arg0, %c0_i32, %c0_i32_0 : i32, i32, i32
  }
  func.func @transform_2(%arg0: i32) -> (i32, i32) {
    %c0_i32 = arith.constant 0 : i32
    %c0_i32_0 = arith.constant 0 : i32
    %c0_i32_1 = arith.constant 0 : i32
    return %c0_i32, %c0_i32_0 : i32, i32
  }
  func.func @transform_3(%arg0: i32) -> (i32, i32) {
    %c0_i32 = arith.constant 0 : i32
    %c0_i32_0 = arith.constant 0 : i32
    %c0_i32_1 = arith.constant 0 : i32
    return %c0_i32, %c0_i32_0 : i32, i32
  }
  func.func @transform_4(%arg0: i32) -> (i32, i32) {
    %c0_i32 = arith.constant 0 : i32
    %c0_i32_0 = arith.constant 0 : i32
    %c0_i32_1 = arith.constant 0 : i32
    return %c0_i32, %c0_i32_0 : i32, i32
  }
  func.func @transform_5(%arg0: i32) -> (i32, i32) {
    %c0_i32 = arith.constant 0 : i32
    %c0_i32_0 = arith.constant 0 : i32
    %c0_i32_1 = arith.constant 0 : i32
    return %c0_i32, %c0_i32_0 : i32, i32
  }
  func.func @transform_6(%arg0: i32) -> (i32, i32) {
    %c0_i32 = arith.constant 0 : i32
    %c0_i32_0 = arith.constant 0 : i32
    %c0_i32_1 = arith.constant 0 : i32
    return %c0_i32, %c0_i32_0 : i32, i32
  }
  func.func @transform_7(%arg0: i32) -> (i32, i32) {
    %c0_i32 = arith.constant 0 : i32
    %c0_i32_0 = arith.constant 0 : i32
    %c0_i32_1 = arith.constant 0 : i32
    return %c0_i32, %c0_i32_0 : i32, i32
  }
  func.func @transform_8(%arg0: i32) -> (i32, i32) {
    %c0_i32 = arith.constant 0 : i32
    %c0_i32_0 = arith.constant 0 : i32
    %c0_i32_1 = arith.constant 0 : i32
    return %c0_i32, %c0_i32_0 : i32, i32
  }
  func.func @transform_9(%arg0: i32) -> (i32, i32) {
    %c0_i32 = arith.constant 0 : i32
    %c0_i32_0 = arith.constant 0 : i32
    %c0_i32_1 = arith.constant 0 : i32
    return %c0_i32, %c0_i32_0 : i32, i32
  }
  func.func @transform_10(%arg0: i32) -> (i32, i32) {
    %c0_i32 = arith.constant 0 : i32
    %c0_i32_0 = arith.constant 0 : i32
    %c0_i32_1 = arith.constant 0 : i32
    return %c0_i32, %c0_i32_0 : i32, i32
  }
  func.func @transform_11(%arg0: i32) -> (i32, i32) {
    %c0_i32 = arith.constant 0 : i32
    %c0_i32_0 = arith.constant 0 : i32
    %c0_i32_1 = arith.constant 0 : i32
    return %c0_i32, %c0_i32_0 : i32, i32
  }
  func.func @transform_12(%arg0: i32) -> (i32, i32) {
    %c0_i32 = arith.constant 0 : i32
    %c0_i32_0 = arith.constant 0 : i32
    %c0_i32_1 = arith.constant 0 : i32
    return %c0_i32, %c0_i32_0 : i32, i32
  }
  func.func @transform_13(%arg0: i32) -> (i32, i32) {
    %c0_i32 = arith.constant 0 : i32
    %c0_i32_0 = arith.constant 0 : i32
    %c0_i32_1 = arith.constant 0 : i32
    return %c0_i32, %c0_i32_0 : i32, i32
  }
  func.func @transform_14(%arg0: i32) -> (i32, i32, i32) {
    %c0_i32 = arith.constant 0 : i32
    %c0_i32_0 = arith.constant 0 : i32
    %c0_i32_1 = arith.constant 0 : i32
    return %arg0, %c0_i32, %c0_i32_0 : i32, i32, i32
  }
}

</mosaic_0001>

<llo_original>
// kernel: denoising_block_forward.1
$region0: #{denoising_block_forward.1}
  #allocation0 [shape = 'u32[]', space=smem, size = 0x4, offset = 0x4, fixed_abs, tag = 'smem constant byte address 0x4 - core index']
  #allocation1 [shape = 'u32[72,128]{1,0:T(1,128)}', space=vmem, size = 0x9000, scoped, tag = 'internal scratch']
  #allocation2 [shape = 'f32[288,256]{1,0:T(8,128)}', space=vmem, size = 0x48000, scoped, tag = 'scratch operand']
  %s0 = inlined_call_operand.vmem [shape: f32[8,256], index: 0, kind: input, shape index: {}]
  %s1 = inlined_call_operand.vmem [shape: f32[2,8,256], index: 1, kind: input, shape index: {}]
  %s2 = inlined_call_operand.vmem [shape: bf16[8,72], index: 2, kind: input, shape index: {}]
  %s3 = inlined_call_operand.vmem [shape: f32[8,1], index: 3, kind: input, shape index: {}]
  %s4 = inlined_call_operand.vmem [shape: f32[8,1], index: 4, kind: input, shape index: {}]
  %s5 = inlined_call_operand.vmem [shape: bf16[8,144], index: 5, kind: input, shape index: {}]
  %s6 = inlined_call_operand.vmem [shape: f32[8,1], index: 6, kind: input, shape index: {}]
  %s7 = inlined_call_operand.vmem [shape: f32[8,1], index: 7, kind: input, shape index: {}]
  %s8 = inlined_call_operand.vmem [shape: bf16[8,216], index: 8, kind: input, shape index: {}]
  %s9 = inlined_call_operand.vmem [shape: f32[8,1], index: 9, kind: input, shape index: {}]
  %s10 = inlined_call_operand.vmem [shape: f32[8,1], index: 10, kind: input, shape index: {}]
  %s11 = inlined_call_operand.vmem [shape: bf16[4,288], index: 11, kind: input, shape index: {}]
  %s12 = inlined_call_operand.vmem [shape: f32[4,1], index: 12, kind: input, shape index: {}]
  %s13 = inlined_call_operand.vmem [shape: f32[4,1], index: 13, kind: input, shape index: {}]
  %s14 = inlined_call_operand.vmem [shape: f32[2,4,256], index: 14, kind: output, shape index: {}]
  %s15 = sld [smem:[#allocation0]]
  $region89: #{denoising_block_forward.1} parent=0
    _
  %s17 = ssub.s32 1, %s15
  %s18 = scalar_select 0, %s17, %s15
  loop: start=0, step=1, limit=4
  $region2: #{denoising_block_forward.1} parent=0 // loop_pre_header
    _
  $region3: #{denoising_block_forward.1} parent=0 // loop_header
    %s20 = sphi 0, %s24
    %p21 = scmp.ge.s32.totalorder %s20, 4
    %s28 = sphi 0, %s28
    %s30 = sphi 0, %s28
    %s31 = sphi 0, %s30
    %s45 = sphi 0, %s31
    %s51 = sphi 0, %s53
    %s54 = sphi 0, %s51
    %s55 = sphi 0, %s54
    %s71 = sphi 0, %s55
    %s75 = sphi 0, %s75
    %s77 = sphi 0, %s75
    %s78 = sphi 0, %s77
    %s92 = sphi 0, %s78
    %s96 = sphi 0, %s96
    %s98 = sphi 0, %s96
    %s99 = sphi 0, %s98
    %s113 = sphi 0, %s99
    %s117 = sphi 0, %s117
    %s119 = sphi 0, %s117
    %s120 = sphi 0, %s119
    %s134 = sphi 0, %s120
    %s138 = sphi 0, %s138
    %s140 = sphi 0, %s138
    %s141 = sphi 0, %s140
    %s155 = sphi 0, %s141
    %s159 = sphi 0, %s159
    %s161 = sphi 0, %s159
    %s162 = sphi 0, %s161
    %s176 = sphi 0, %s162
    %s180 = sphi 0, %s180
    %s182 = sphi 0, %s180
    %s183 = sphi 0, %s182
    %s197 = sphi 0, %s183
    %s201 = sphi 0, %s201
    %s203 = sphi 0, %s201
    %s204 = sphi 0, %s203
    %s218 = sphi 0, %s204
    %s222 = sphi 0, %s222
    %s224 = sphi 0, %s222
    %s225 = sphi 0, %s224
    %s239 = sphi 0, %s225
    %s243 = sphi 0, %s243
    %s245 = sphi 0, %s243
    %s246 = sphi 0, %s245
    %s260 = sphi 0, %s246
    %s264 = sphi 0, %s264
    %s266 = sphi 0, %s264
    %s267 = sphi 0, %s266
    %s281 = sphi 0, %s267
    %s285 = sphi 0, %s285
    %s287 = sphi 0, %s285
    %s288 = sphi 0, %s287
    %s302 = sphi 0, %s288
    %s306 = sphi 0, %s306
    %s308 = sphi 0, %s306
    %s309 = sphi 0, %s308
    %s323 = sphi 0, %s309
    %s329 = sphi 0, %s331
    %s332 = sphi 0, %s329
    %s333 = sphi 0, %s332
    %s349 = sphi 0, %s333
  $region4: #{denoising_block_forward.1} parent=0 // loop_header_branch
    %23 = sbr.rel (%p21) target = $region8
  $region5: #{denoising_block_forward.1} parent=0 // loop_body
    %s25 = ssub.s32 %s20, 1
    %s26 = ssub.s32 %s20, 2
    %s27 = sadd.s32 %s20, 1
    %s29 = sadd.s32 %s28, 1
    %p32 = scmp.eq.s32.totalorder %s20, 1
    %p33 = scmp.ne.s32.totalorder %s28, %s30
    %p34 = scmp.eq.s32.totalorder %s20, 0
    %p35 = por %p33, %p34
    %p36 = scmp.ne.s32.totalorder %s28, %s30
    %p37 = scmp.eq.s32.totalorder %s25, 1
    %p38 = por %p36, %p37
    %p39 = scmp.ne.s32.totalorder %s30, %s31
    %p40 = scmp.eq.s32.totalorder %s25, 0
    %p41 = por %p39, %p40
    %p42 = scmp.ne.s32.totalorder %s30, %s31
    %p43 = scmp.eq.s32.totalorder %s26, 1
    %p44 = por %p42, %p43
    %p46 = scmp.ne.s32.totalorder %s31, %s45
    %p47 = scmp.eq.s32.totalorder %s26, 0
    %p48 = por %p46, %p47
    %s49 = ssub.s32 %s20, %s27
    %p50 = scmp.eq.s32.totalorder %s49, 0
    %s52 = sadd.s32 %s51, 1
    %s53 = scalar_select %p50, %s51, %s52
    %p56 = pneg %p50
    %p57 = scmp.eq.s32.totalorder %s20, 1
    %p58 = por %p56, %p57
    %p59 = scmp.ne.s32.totalorder %s51, %s54
    %p60 = scmp.eq.s32.totalorder %s20, 0
    %p61 = por %p59, %p60
    %p62 = scmp.ne.s32.totalorder %s51, %s54
    %p63 = scmp.eq.s32.totalorder %s25, 1
    %p64 = por %p62, %p63
    %p65 = scmp.ne.s32.totalorder %s54, %s55
    %p66 = scmp.eq.s32.totalorder %s25, 0
    %p67 = por %p65, %p66
    %p68 = scmp.ne.s32.totalorder %s54, %s55
    %p69 = scmp.eq.s32.totalorder %s26, 1
    %p70 = por %p68, %p69
    %p72 = scmp.ne.s32.totalorder %s55, %s71
    %p73 = scmp.eq.s32.totalorder %s26, 0
    %p74 = por %p72, %p73
    %s76 = sadd.s32 %s75, 1
    %p79 = scmp.eq.s32.totalorder %s20, 1
    %p80 = scmp.ne.s32.totalorder %s75, %s77
    %p81 = scmp.eq.s32.totalorder %s20, 0
    %p82 = por %p80, %p81
    %p83 = scmp.ne.s32.totalorder %s75, %s77
    %p84 = scmp.eq.s32.totalorder %s25, 1
    %p85 = por %p83, %p84
    %p86 = scmp.ne.s32.totalorder %s77, %s78
    %p87 = scmp.eq.s32.totalorder %s25, 0
    %p88 = por %p86, %p87
    %p89 = scmp.ne.s32.totalorder %s77, %s78
    %p90 = scmp.eq.s32.totalorder %s26, 1
    %p91 = por %p89, %p90
    %p93 = scmp.ne.s32.totalorder %s78, %s92
    %p94 = scmp.eq.s32.totalorder %s26, 0
    %p95 = por %p93, %p94
    %s97 = sadd.s32 %s96, 1
    %p100 = scmp.eq.s32.totalorder %s20, 1
    %p101 = scmp.ne.s32.totalorder %s96, %s98
    %p102 = scmp.eq.s32.totalorder %s20, 0
    %p103 = por %p101, %p102
    %p104 = scmp.ne.s32.totalorder %s96, %s98
    %p105 = scmp.eq.s32.totalorder %s25, 1
    %p106 = por %p104, %p105
    %p107 = scmp.ne.s32.totalorder %s98, %s99
    %p108 = scmp.eq.s32.totalorder %s25, 0
    %p109 = por %p107, %p108
    %p110 = scmp.ne.s32.totalorder %s98, %s99
    %p111 = scmp.eq.s32.totalorder %s26, 1
    %p112 = por %p110, %p111
    %p114 = scmp.ne.s32.totalorder %s99, %s113
    %p115 = scmp.eq.s32.totalorder %s26, 0
    %p116 = por %p114, %p115
    %s118 = sadd.s32 %s117, 1
    %p121 = scmp.eq.s32.totalorder %s20, 1
    %p122 = scmp.ne.s32.totalorder %s117, %s119
    %p123 = scmp.eq.s32.totalorder %s20, 0
    %p124 = por %p122, %p123
    %p125 = scmp.ne.s32.totalorder %s117, %s119
    %p126 = scmp.eq.s32.totalorder %s25, 1
    %p127 = por %p125, %p126
    %p128 = scmp.ne.s32.totalorder %s119, %s120
    %p129 = scmp.eq.s32.totalorder %s25, 0
    %p130 = por %p128, %p129
    %p131 = scmp.ne.s32.totalorder %s119, %s120
    %p132 = scmp.eq.s32.totalorder %s26, 1
    %p133 = por %p131, %p132
    %p135 = scmp.ne.s32.totalorder %s120, %s134
    %p136 = scmp.eq.s32.totalorder %s26, 0
    %p137 = por %p135, %p136
    %s139 = sadd.s32 %s138, 1
    %p142 = scmp.eq.s32.totalorder %s20, 1
    %p143 = scmp.ne.s32.totalorder %s138, %s140
    %p144 = scmp.eq.s32.totalorder %s20, 0
    %p145 = por %p143, %p144
    %p146 = scmp.ne.s32.totalorder %s138, %s140
    %p147 = scmp.eq.s32.totalorder %s25, 1
    %p148 = por %p146, %p147
    %p149 = scmp.ne.s32.totalorder %s140, %s141
    %p150 = scmp.eq.s32.totalorder %s25, 0
    %p151 = por %p149, %p150
    %p152 = scmp.ne.s32.totalorder %s140, %s141
    %p153 = scmp.eq.s32.totalorder %s26, 1
    %p154 = por %p152, %p153
    %p156 = scmp.ne.s32.totalorder %s141, %s155
    %p157 = scmp.eq.s32.totalorder %s26, 0
    %p158 = por %p156, %p157
    %s160 = sadd.s32 %s159, 1
    %p163 = scmp.eq.s32.totalorder %s20, 1
    %p164 = scmp.ne.s32.totalorder %s159, %s161
    %p165 = scmp.eq.s32.totalorder %s20, 0
    %p166 = por %p164, %p165
    %p167 = scmp.ne.s32.totalorder %s159, %s161
    %p168 = scmp.eq.s32.totalorder %s25, 1
    %p169 = por %p167, %p168
    %p170 = scmp.ne.s32.totalorder %s161, %s162
    %p171 = scmp.eq.s32.totalorder %s25, 0
    %p172 = por %p170, %p171
    %p173 = scmp.ne.s32.totalorder %s161, %s162
    %p174 = scmp.eq.s32.totalorder %s26, 1
    %p175 = por %p173, %p174
    %p177 = scmp.ne.s32.totalorder %s162, %s176
    %p178 = scmp.eq.s32.totalorder %s26, 0
    %p179 = por %p177, %p178
    %s181 = sadd.s32 %s180, 1
    %p184 = scmp.eq.s32.totalorder %s20, 1
    %p185 = scmp.ne.s32.totalorder %s180, %s182
    %p186 = scmp.eq.s32.totalorder %s20, 0
    %p187 = por %p185, %p186
    %p188 = scmp.ne.s32.totalorder %s180, %s182
    %p189 = scmp.eq.s32.totalorder %s25, 1
    %p190 = por %p188, %p189
    %p191 = scmp.ne.s32.totalorder %s182, %s183
    %p192 = scmp.eq.s32.totalorder %s25, 0
    %p193 = por %p191, %p192
    %p194 = scmp.ne.s32.totalorder %s182, %s183
    %p195 = scmp.eq.s32.totalorder %s26, 1
    %p196 = por %p194, %p195
    %p198 = scmp.ne.s32.totalorder %s183, %s197
    %p199 = scmp.eq.s32.totalorder %s26, 0
    %p200 = por %p198, %p199
    %s202 = sadd.s32 %s201, 1
    %p205 = scmp.eq.s32.totalorder %s20, 1
    %p206 = scmp.ne.s32.totalorder %s201, %s203
    %p207 = scmp.eq.s32.totalorder %s20, 0
    %p208 = por %p206, %p207
    %p209 = scmp.ne.s32.totalorder %s201, %s203
    %p210 = scmp.eq.s32.totalorder %s25, 1
    %p211 = por %p209, %p210
    %p212 = scmp.ne.s32.totalorder %s203, %s204
    %p213 = scmp.eq.s32.totalorder %s25, 0
    %p214 = por %p212, %p213
    %p215 = scmp.ne.s32.totalorder %s203, %s204
    %p216 = scmp.eq.s32.totalorder %s26, 1
    %p217 = por %p215, %p216
    %p219 = scmp.ne.s32.totalorder %s204, %s218
    %p220 = scmp.eq.s32.totalorder %s26, 0
    %p221 = por %p219, %p220
    %s223 = sadd.s32 %s222, 1
    %p226 = scmp.eq.s32.totalorder %s20, 1
    %p227 = scmp.ne.s32.totalorder %s222, %s224
    %p228 = scmp.eq.s32.totalorder %s20, 0
    %p229 = por %p227, %p228
    %p230 = scmp.ne.s32.totalorder %s222, %s224
    %p231 = scmp.eq.s32.totalorder %s25, 1
    %p232 = por %p230, %p231
    %p233 = scmp.ne.s32.totalorder %s224, %s225
    %p234 = scmp.eq.s32.totalorder %s25, 0
    %p235 = por %p233, %p234
    %p236 = scmp.ne.s32.totalorder %s224, %s225
    %p237 = scmp.eq.s32.totalorder %s26, 1
    %p238 = por %p236, %p237
    %p240 = scmp.ne.s32.totalorder %s225, %s239
    %p241 = scmp.eq.s32.totalorder %s26, 0
    %p242 = por %p240, %p241
    %s244 = sadd.s32 %s243, 1
    %p247 = scmp.eq.s32.totalorder %s20, 1
    %p248 = scmp.ne.s32.totalorder %s243, %s245
    %p249 = scmp.eq.s32.totalorder %s20, 0
    %p250 = por %p248, %p249
    %p251 = scmp.ne.s32.totalorder %s243, %s245
    %p252 = scmp.eq.s32.totalorder %s25, 1
    %p253 = por %p251, %p252
    %p254 = scmp.ne.s32.totalorder %s245, %s246
    %p255 = scmp.eq.s32.totalorder %s25, 0
    %p256 = por %p254, %p255
    %p257 = scmp.ne.s32.totalorder %s245, %s246
    %p258 = scmp.eq.s32.totalorder %s26, 1
    %p259 = por %p257, %p258
    %p261 = scmp.ne.s32.totalorder %s246, %s260
    %p262 = scmp.eq.s32.totalorder %s26, 0
    %p263 = por %p261, %p262
    %s265 = sadd.s32 %s264, 1
    %p268 = scmp.eq.s32.totalorder %s20, 1
    %p269 = scmp.ne.s32.totalorder %s264, %s266
    %p270 = scmp.eq.s32.totalorder %s20, 0
    %p271 = por %p269, %p270
    %p272 = scmp.ne.s32.totalorder %s264, %s266
    %p273 = scmp.eq.s32.totalorder %s25, 1
    %p274 = por %p272, %p273
    %p275 = scmp.ne.s32.totalorder %s266, %s267
    %p276 = scmp.eq.s32.totalorder %s25, 0
    %p277 = por %p275, %p276
    %p278 = scmp.ne.s32.totalorder %s266, %s267
    %p279 = scmp.eq.s32.totalorder %s26, 1
    %p280 = por %p278, %p279
    %p282 = scmp.ne.s32.totalorder %s267, %s281
    %p283 = scmp.eq.s32.totalorder %s26, 0
    %p284 = por %p282, %p283
    %s286 = sadd.s32 %s285, 1
    %p289 = scmp.eq.s32.totalorder %s20, 1
    %p290 = scmp.ne.s32.totalorder %s285, %s287
    %p291 = scmp.eq.s32.totalorder %s20, 0
    %p292 = por %p290, %p291
    %p293 = scmp.ne.s32.totalorder %s285, %s287
    %p294 = scmp.eq.s32.totalorder %s25, 1
    %p295 = por %p293, %p294
    %p296 = scmp.ne.s32.totalorder %s287, %s288
    %p297 = scmp.eq.s32.totalorder %s25, 0
    %p298 = por %p296, %p297
    %p299 = scmp.ne.s32.totalorder %s287, %s288
    %p300 = scmp.eq.s32.totalorder %s26, 1
    %p301 = por %p299, %p300
    %p303 = scmp.ne.s32.totalorder %s288, %s302
    %p304 = scmp.eq.s32.totalorder %s26, 0
    %p305 = por %p303, %p304
    %s307 = sadd.s32 %s306, 1
    %p310 = scmp.eq.s32.totalorder %s20, 1
    %p311 = scmp.ne.s32.totalorder %s306, %s308
    %p312 = scmp.eq.s32.totalorder %s20, 0
    %p313 = por %p311, %p312
    %p314 = scmp.ne.s32.totalorder %s306, %s308
    %p315 = scmp.eq.s32.totalorder %s25, 1
    %p316 = por %p314, %p315
    %p317 = scmp.ne.s32.totalorder %s308, %s309
    %p318 = scmp.eq.s32.totalorder %s25, 0
    %p319 = por %p317, %p318
    %p320 = scmp.ne.s32.totalorder %s308, %s309
    %p321 = scmp.eq.s32.totalorder %s26, 1
    %p322 = por %p320, %p321
    %p324 = scmp.ne.s32.totalorder %s309, %s323
    %p325 = scmp.eq.s32.totalorder %s26, 0
    %p326 = por %p324, %p325
    %s327 = ssub.s32 %s20, %s27
    %p328 = scmp.eq.s32.totalorder %s327, 0
    %s330 = sadd.s32 %s329, 1
    %s331 = scalar_select %p328, %s329, %s330
    %p334 = pneg %p328
    %p335 = scmp.eq.s32.totalorder %s20, 1
    %p336 = por %p334, %p335
    %p337 = scmp.ne.s32.totalorder %s329, %s332
    %p338 = scmp.eq.s32.totalorder %s20, 0
    %p339 = por %p337, %p338
    %p340 = scmp.ne.s32.totalorder %s329, %s332
    %p341 = scmp.eq.s32.totalorder %s25, 1
    %p342 = por %p340, %p341
    %p343 = scmp.ne.s32.totalorder %s332, %s333
    %p344 = scmp.eq.s32.totalorder %s25, 0
    %p345 = por %p343, %p344
    %p346 = scmp.ne.s32.totalorder %s332, %s333
    %p347 = scmp.eq.s32.totalorder %s26, 1
    %p348 = por %p346, %p347
    %p350 = scmp.ne.s32.totalorder %s333, %s349
    %p351 = scmp.eq.s32.totalorder %s26, 0
    %p352 = por %p350, %p351
    %p353 = scmp.le.s32.totalorder 1, %s20
    %p354 = scmp.lt.s32.totalorder %s20, 3
    %p355 = pnand %p353, %p354
    %p356 = pneg %p355
    // Predicated region
    $region9: #{denoising_block_forward.1} parent=5 // pred_check
      _
    $region10: #{denoising_block_forward.1} parent=5 // pred_check_branch
      %358 = sbr.rel (%p355) target = $region12
    $region11: #{denoising_block_forward.1} parent=5 // pred_region
      %s359 = ssub.s32 %s20, 1
      // Predicated region
      $region13: #{denoising_block_forward.1} parent=11 // pred_check
        %p360 = pneg %p41
      $region14: #{denoising_block_forward.1} parent=11 // pred_check_branch
        %362 = sbr.rel (%p360) target = $region16
      $region15: #{denoising_block_forward.1} parent=11 // pred_region
        _
      $region16: #{denoising_block_forward.1} parent=11 // pred_fallthru
        _
      // Predicated region
      $region17: #{denoising_block_forward.1} parent=11 // pred_check
        %p363 = pneg %p88
      $region18: #{denoising_block_forward.1} parent=11 // pred_check_branch
        %365 = sbr.rel (%p363) target = $region20
      $region19: #{denoising_block_forward.1} parent=11 // pred_region
        _
      $region20: #{denoising_block_forward.1} parent=11 // pred_fallthru
        _
      // Predicated region
      $region21: #{denoising_block_forward.1} parent=11 // pred_check
        %p366 = pneg %p109
      $region22: #{denoising_block_forward.1} parent=11 // pred_check_branch
        %368 = sbr.rel (%p366) target = $region24
      $region23: #{denoising_block_forward.1} parent=11 // pred_region
        _
      $region24: #{denoising_block_forward.1} parent=11 // pred_fallthru
        _
      // Predicated region
      $region25: #{denoising_block_forward.1} parent=11 // pred_check
        %p369 = pneg %p130
      $region26: #{denoising_block_forward.1} parent=11 // pred_check_branch
        %371 = sbr.rel (%p369) target = $region28
      $region27: #{denoising_block_forward.1} parent=11 // pred_region
        _
      $region28: #{denoising_block_forward.1} parent=11 // pred_fallthru
        _
      // Predicated region
      $region29: #{denoising_block_forward.1} parent=11 // pred_check
        %p372 = pneg %p151
      $region30: #{denoising_block_forward.1} parent=11 // pred_check_branch
        %374 = sbr.rel (%p372) target = $region32
      $region31: #{denoising_block_forward.1} parent=11 // pred_region
        _
      $region32: #{denoising_block_forward.1} parent=11 // pred_fallthru
        _
      // Predicated region
      $region33: #{denoising_block_forward.1} parent=11 // pred_check
        %p375 = pneg %p172
      $region34: #{denoising_block_forward.1} parent=11 // pred_check_branch
        %377 = sbr.rel (%p375) target = $region36
      $region35: #{denoising_block_forward.1} parent=11 // pred_region
        _
      $region36: #{denoising_block_forward.1} parent=11 // pred_fallthru
        _
      // Predicated region
      $region37: #{denoising_block_forward.1} parent=11 // pred_check
        %p378 = pneg %p193
      $region38: #{denoising_block_forward.1} parent=11 // pred_check_branch
        %380 = sbr.rel (%p378) target = $region40
      $region39: #{denoising_block_forward.1} parent=11 // pred_region
        _
      $region40: #{denoising_block_forward.1} parent=11 // pred_fallthru
        _
      // Predicated region
      $region41: #{denoising_block_forward.1} parent=11 // pred_check
        %p381 = pneg %p214
      $region42: #{denoising_block_forward.1} parent=11 // pred_check_branch
        %383 = sbr.rel (%p381) target = $region44
      $region43: #{denoising_block_forward.1} parent=11 // pred_region
        _
      $region44: #{denoising_block_forward.1} parent=11 // pred_fallthru
        _
      // Predicated region
      $region45: #{denoising_block_forward.1} parent=11 // pred_check
        %p384 = pneg %p235
      $region46: #{denoising_block_forward.1} parent=11 // pred_check_branch
        %386 = sbr.rel (%p384) target = $region48
      $region47: #{denoising_block_forward.1} parent=11 // pred_region
        _
      $region48: #{denoising_block_forward.1} parent=11 // pred_fallthru
        _
      // Predicated region
      $region49: #{denoising_block_forward.1} parent=11 // pred_check
        %p387 = pneg %p256
      $region50: #{denoising_block_forward.1} parent=11 // pred_check_branch
        %389 = sbr.rel (%p387) target = $region52
      $region51: #{denoising_block_forward.1} parent=11 // pred_region
        _
      $region52: #{denoising_block_forward.1} parent=11 // pred_fallthru
        _
      // Predicated region
      $region53: #{denoising_block_forward.1} parent=11 // pred_check
        %p390 = pneg %p277
      $region54: #{denoising_block_forward.1} parent=11 // pred_check_branch
        %392 = sbr.rel (%p390) target = $region56
      $region55: #{denoising_block_forward.1} parent=11 // pred_region
        _
      $region56: #{denoising_block_forward.1} parent=11 // pred_fallthru
        _
      // Predicated region
      $region57: #{denoising_block_forward.1} parent=11 // pred_check
        %p393 = pneg %p298
      $region58: #{denoising_block_forward.1} parent=11 // pred_check_branch
        %395 = sbr.rel (%p393) target = $region60
      $region59: #{denoising_block_forward.1} parent=11 // pred_region
        _
      $region60: #{denoising_block_forward.1} parent=11 // pred_fallthru
        _
      // Predicated region
      $region61: #{denoising_block_forward.1} parent=11 // pred_check
        %p396 = pneg %p319
      $region62: #{denoising_block_forward.1} parent=11 // pred_check_branch
        %398 = sbr.rel (%p396) target = $region64
      $region63: #{denoising_block_forward.1} parent=11 // pred_region
        _
      $region64: #{denoising_block_forward.1} parent=11 // pred_fallthru
        _
    $region12: #{denoising_block_forward.1} parent=5 // pred_fallthru
      _
    %p399 = scmp.lt.s32.totalorder %s20, 2
    // Predicated region
    $region65: #{denoising_block_forward.1} parent=5 // pred_check
      %p400 = pneg %p399
    $region66: #{denoising_block_forward.1} parent=5 // pred_check_branch
      %402 = sbr.rel (%p400) target = $region68
    $region67: #{denoising_block_forward.1} parent=5 // pred_region
      // Predicated region
      $region69: #{denoising_block_forward.1} parent=67 // pred_check
        %p403 = pneg %p61
      $region70: #{denoising_block_forward.1} parent=67 // pred_check_branch
        %405 = sbr.rel (%p403) target = $region72
      $region71: #{denoising_block_forward.1} parent=67 // pred_region
        %p406 = scmp.lt.s32.totalorder %s20, 1
        %s407 = scalar_select %p406, %s20, 1
        %s408 = smul.addr %s407, 2
        %s409 = smul.addr %s408, 8
        %s410 = scalar_lea.vmem %s1, %s409
      $region72: #{denoising_block_forward.1} parent=67 // pred_fallthru
        _
    $region68: #{denoising_block_forward.1} parent=5 // pred_fallthru
      _
    %p411 = scmp.le.s32.totalorder 1, %s20
    %p412 = scmp.lt.s32.totalorder %s20, 3
    %p413 = pnand %p411, %p412
    %p414 = pneg %p413
    // Predicated region
    $region73: #{denoising_block_forward.1} parent=5 // pred_check
      _
    $region74: #{denoising_block_forward.1} parent=5 // pred_check_branch
      %416 = sbr.rel (%p413) target = $region76
    $region75: #{denoising_block_forward.1} parent=5 // pred_region
      %s417 = ssub.s32 %s20, 1
      %p418 = pneg %p41
      %p419 = pneg %p38
      %p420 = scmp.lt.s32.totalorder %s25, 1
      %s421 = scalar_select %p420, %s25, 1
      %s422 = smul.addr %s421, 2
      %s423 = smul.addr %s422, 8
      %s424 = scalar_lea.vmem %s1, %s423
      %p425 = pneg %p67
      %p426 = pneg %p64
      %p427 = pneg %p88
      %p428 = pneg %p85
      %p429 = pneg %p109
      %p430 = pneg %p106
      %p431 = pneg %p130
      %p432 = pneg %p127
      %p433 = pneg %p151
      %p434 = pneg %p148
      %p435 = pneg %p172
      %p436 = pneg %p169
      %p437 = pneg %p193
      %p438 = pneg %p190
      %p439 = pneg %p214
      %p440 = pneg %p211
      %p441 = pneg %p235
      %p442 = pneg %p232
      %p443 = pneg %p256
      %p444 = pneg %p253
      %p445 = pneg %p277
      %p446 = pneg %p274
      %p447 = pneg %p298
      %p448 = pneg %p295
      %p449 = pneg %p319
      %p450 = pneg %p316
      %p451 = pneg %p345
      %p452 = pneg %p342
      %p453 = scmp.lt.s32.totalorder %s25, 1
      %s454 = scalar_select %p453, %s25, 1
      %s455 = smul.addr %s454, 2
      %s456 = smul.addr %s455, 4
      %s457 = scalar_lea.vmem %s14, %s456
      %p458 = scmp.lt.s32.totalorder %s25, 1
      %s459 = scalar_select %p458, %s25, 1
      %s460 = smul.addr %s459, 2
      %s461 = smul.addr %s460, 8
      %s462 = scalar_lea.vmem %s1, %s461
      %p463 = scmp.lt.s32.totalorder %s25, 1
      %s464 = scalar_select %p463, %s25, 1
      %s465 = smul.addr %s464, 2
      %s466 = smul.addr %s465, 4
      %s467 = scalar_lea.vmem %s14, %s466
      %v469 = vld [vmem:[%s0] sm:$0xff]
      %v470 = vld [vmem:[%s0 + $0x8] sm:$0xff]
      %v471 = vperm.slane %v469, 0
      %v472 = vperm.slane %v470, 0
      %v473 = vperm.slane %v469, 1
      %v474 = vperm.slane %v470, 1
      %v475 = vperm.slane %v469, 2
      %v476 = vperm.slane %v470, 2
      %v477 = vperm.slane %v469, 3
      %v478 = vperm.slane %v470, 3
      %v479 = vperm.slane %v469, 4
      %v480 = vperm.slane %v470, 4
      %v481 = vperm.slane %v469, 5
      %v482 = vperm.slane %v470, 5
      %v483 = vperm.slane %v469, 6
      %v484 = vperm.slane %v470, 6
      %v485 = vperm.slane %v469, 7
      %v486 = vperm.slane %v470, 7
      %v487 = vld [vmem:[%s462] sm:$0xff]
      %v488 = vld [vmem:[%s462 + $0x8] sm:$0xff]
      %489 = vrot.lane.b32.xlu0 %v487, 17
      %v490 = vpop.permute.xlu0 %489
      %491 = vrot.lane.b32.xlu0 %v488, 17
      %v492 = vpop.permute.xlu0 %491
      %v493 = vlaneseq
      %v494 = vand.u32 %v493, 127
      %vm495 = vcmp.lt.s32.totalorder %v494, 17
      %v496 = vsel %vm495, %v490, %v492
      %v497 = vsel %vm495, %v492, %v490
      %v498 = vmul.f32 %v497, %v471
      %v499 = vmul.f32 %v496, %v472
      %500 = vst [vmem:[#allocation2] sm:$0xff] %v498
      %501 = vst [vmem:[#allocation2 + $0x8] sm:$0xff] %v499
      %502 = vrot.lane.b32.xlu0 %v487, 16
      %v503 = vpop.permute.xlu0 %502
      %504 = vrot.lane.b32.xlu0 %v488, 16
      %v505 = vpop.permute.xlu0 %504
      %vm506 = vcmp.lt.s32.totalorder %v494, 16
      %v507 = vsel %vm506, %v503, %v505
      %v508 = vsel %vm506, %v505, %v503
      %v509 = vmul.f32 %v508, %v473
      %v510 = vmul.f32 %v507, %v474
      %511 = vst [vmem:[#allocation2 + $0x10] sm:$0xff] %v509
      %512 = vst [vmem:[#allocation2 + $0x18] sm:$0xff] %v510
      %513 = vrot.lane.b32.xlu0 %v487, 15
      %v514 = vpop.permute.xlu0 %513
      %515 = vrot.lane.b32.xlu0 %v488, 15
      %v516 = vpop.permute.xlu0 %515
      %vm517 = vcmp.lt.s32.totalorder %v494, 15
      %v518 = vsel %vm517, %v514, %v516
      %v519 = vsel %vm517, %v516, %v514
      %v520 = vmul.f32 %v519, %v475
      %v521 = vmul.f32 %v518, %v476
      %522 = vst [vmem:[#allocation2 + $0x20] sm:$0xff] %v520
      %523 = vst [vmem:[#allocation2 + $0x28] sm:$0xff] %v521
      %524 = vrot.lane.b32.xlu0 %v487, 1
      %v525 = vpop.permute.xlu0 %524
      %526 = vrot.lane.b32.xlu0 %v488, 1
      %v527 = vpop.permute.xlu0 %526
      %vm528 = vcmp.lt.s32.totalorder %v494, 1
      %v529 = vsel %vm528, %v525, %v527
      %v530 = vsel %vm528, %v527, %v525
      %v531 = vmul.f32 %v530, %v477
      %v532 = vmul.f32 %v529, %v478
      %533 = vst [vmem:[#allocation2 + $0x30] sm:$0xff] %v531
      %534 = vst [vmem:[#allocation2 + $0x38] sm:$0xff] %v532
      %535 = vst [vmem:[#allocation2 + $0x40] sm:$0xff] %v487
      %536 = vst [vmem:[#allocation2 + $0x48] sm:$0xff] %v488
      %537 = vrot.lane.b32.xlu0 %v487, 127
      %v538 = vpop.permute.xlu0 %537
      %539 = vrot.lane.b32.xlu0 %v488, 127
      %v540 = vpop.permute.xlu0 %539
      %vm541 = vcmp.lt.s32.totalorder %v494, 127
      %v542 = vsel %vm541, %v538, %v540
      %v543 = vsel %vm541, %v540, %v538
      %v544 = vmul.f32 %v542, %v479
      %v545 = vmul.f32 %v543, %v480
      %546 = vst [vmem:[#allocation2 + $0x50] sm:$0xff] %v544
      %547 = vst [vmem:[#allocation2 + $0x58] sm:$0xff] %v545
      %548 = vrot.lane.b32.xlu0 %v487, 113
      %v549 = vpop.permute.xlu0 %548
      %550 = vrot.lane.b32.xlu0 %v488, 113
      %v551 = vpop.permute.xlu0 %550
      %vm552 = vcmp.lt.s32.totalorder %v494, 113
      %v553 = vsel %vm552, %v549, %v551
      %v554 = vsel %vm552, %v551, %v549
      %v555 = vmul.f32 %v553, %v481
      %v556 = vmul.f32 %v554, %v482
      %557 = vst [vmem:[#allocation2 + $0x60] sm:$0xff] %v555
      %558 = vst [vmem:[#allocation2 + $0x68] sm:$0xff] %v556
      %559 = vrot.lane.b32.xlu0 %v487, 112
      %v560 = vpop.permute.xlu0 %559
      %561 = vrot.lane.b32.xlu0 %v488, 112
      %v562 = vpop.permute.xlu0 %561
      %vm563 = vcmp.lt.s32.totalorder %v494, 112
      %v564 = vsel %vm563, %v560, %v562
      %v565 = vsel %vm563, %v562, %v560
      %v566 = vmul.f32 %v564, %v483
      %v567 = vmul.f32 %v565, %v484
      %568 = vst [vmem:[#allocation2 + $0x70] sm:$0xff] %v566
      %569 = vst [vmem:[#allocation2 + $0x78] sm:$0xff] %v567
      %570 = vrot.lane.b32.xlu0 %v487, 111
      %v571 = vpop.permute.xlu0 %570
      %572 = vrot.lane.b32.xlu0 %v488, 111
      %v573 = vpop.permute.xlu0 %572
      %vm574 = vcmp.lt.s32.totalorder %v494, 111
      %v575 = vsel %vm574, %v571, %v573
      %v576 = vsel %vm574, %v573, %v571
      %v577 = vmul.f32 %v575, %v485
      %v578 = vmul.f32 %v576, %v486
      %579 = vst [vmem:[#allocation2 + $0x80] sm:$0xff] %v577
      %580 = vst [vmem:[#allocation2 + $0x88] sm:$0xff] %v578
      %v581 = vld [vmem:[#allocation2] sm:$0xff]
      %v582 = vld [vmem:[#allocation2 + $0x8] sm:$0xff]
      %v583 = vld [vmem:[#allocation2 + $0x10] sm:$0xff]
      %v584 = vld [vmem:[#allocation2 + $0x18] sm:$0xff]
      %v585 = vld [vmem:[#allocation2 + $0x20] sm:$0xff]
      %v586 = vld [vmem:[#allocation2 + $0x28] sm:$0xff]
      %v587 = vld [vmem:[#allocation2 + $0x30] sm:$0xff]
      %v588 = vld [vmem:[#allocation2 + $0x38] sm:$0xff]
      %v589 = vld [vmem:[#allocation2 + $0x40] sm:$0xff]
      %v590 = vld [vmem:[#allocation2 + $0x48] sm:$0xff]
      %v591 = vld [vmem:[#allocation2 + $0x50] sm:$0xff]
      %v592 = vld [vmem:[#allocation2 + $0x58] sm:$0xff]
      %v593 = vld [vmem:[#allocation2 + $0x60] sm:$0xff]
      %v594 = vld [vmem:[#allocation2 + $0x68] sm:$0xff]
      %v595 = vld [vmem:[#allocation2 + $0x70] sm:$0xff]
      %v596 = vld [vmem:[#allocation2 + $0x78] sm:$0xff]
      %v597 = vld [vmem:[#allocation2 + $0x80] sm:$0xff]
      %v598 = vld [vmem:[#allocation2 + $0x88] sm:$0xff]
      %v599 = vpack.c.bf16 %v583, %v581
      %v600 = vpack.c.bf16 %v584, %v582
      %v601 = vpack.c.bf16 %v587, %v585
      %v602 = vpack.c.bf16 %v588, %v586
      %v603 = vpack.c.bf16 %v591, %v589
      %v604 = vpack.c.bf16 %v592, %v590
      %v605 = vpack.c.bf16 %v595, %v593
      %v606 = vpack.c.bf16 %v596, %v594
      %v607 = vpack.c.bf16 %v597, %v597
      %v608 = vpack.c.bf16 %v598, %v598
      %v609 = vld [vmem:[%s2] sm:$0xf]
      %v610 = vld [vmem:[%s3] sm:$0xff]
      %612 = vset.pattern.permute.xlu0 0
      %613 = vperm.xlu0 %612, %v610
      %v614 = vpop.permute.xlu0 %613
      %vm616 = vcmask 588800
      %v618 = vsel %vm616, %v609, 0
      %vm620 = vcmask 1043456
      %v622 = vsel %vm620, %v607, 0
      %v625 = vsel %vm620, %v608, 0
      %627 = vmatpush.bf16.msra.mxu0 0
      %628 = vmatpush.bf16.msra.mxu0 0
      %629 = vmatpush.bf16.msra.mxu0 0
      %630 = vmatpush.bf16.msra.mxu0 %v622
      %631 = vmatpush.bf16.msra.mxu0 %v605
      %632 = vmatpush.bf16.msra.mxu0 %v603
      %633 = vmatpush.bf16.msra.mxu0 %v601
      %634 = vmatpush.bf16.msra.mxu0 %v599
      %635 = vmatmul.bf16.gmra.mxu0 %v618
      %v636 = vpop.f32.mrf.mxu0
      %v637 = vadd.f32 %v614, %v636
      %v638 = vpop.f32.mrf.mxu0
      %639 = vdwg.mxu0
      %640 = vmatpush.bf16.msra.mxu0 0
      %641 = vmatpush.bf16.msra.mxu0 0
      %642 = vmatpush.bf16.msra.mxu0 0
      %643 = vmatpush.bf16.msra.mxu0 %v625
      %644 = vmatpush.bf16.msra.mxu0 %v606
      %645 = vmatpush.bf16.msra.mxu0 %v604
      %646 = vmatpush.bf16.msra.mxu0 %v602
      %647 = vmatpush.bf16.msra.mxu0 %v600
      %648 = vmatmul.bf16.gmra.mxu0 %v618
      %v649 = vpop.f32.mrf.mxu0
      %v650 = vadd.f32 %v614, %v649
      %v651 = vpop.f32.mrf.mxu0
      %652 = vdwg.mxu0
      %vm653 = vcmp.gt.f32.partialorder %v637, 0.0
      %vm654 = vcmp.gt.f32.partialorder %v650, 0.0
      %v655 = vld [vmem:[%s4] sm:$0xff]
      %657 = vset.pattern.permute.xlu0 0
      %658 = vperm.xlu0 %657, %v655
      %v659 = vpop.permute.xlu0 %658
      %v661 = vmul.f32 %v659, %v637
      %v662 = vmul.f32 %v659, %v650
      %v663 = vsel %vm653, %v637, %v661
      %v664 = vsel %vm654, %v650, %v662
      %665 = vrot.lane.b32.xlu0 %v663, 17
      %v666 = vpop.permute.xlu0 %665
      %667 = vrot.lane.b32.xlu0 %v664, 17
      %v668 = vpop.permute.xlu0 %667
      %v669 = vsel %vm495, %v666, %v668
      %v670 = vsel %vm495, %v668, %v666
      %v671 = vmul.f32 %v670, %v471
      %v672 = vmul.f32 %v669, %v472
      %673 = vst [vmem:[#allocation2 + $0x90] sm:$0xff] %v671
      %674 = vst [vmem:[#allocation2 + $0x98] sm:$0xff] %v672
      %675 = vrot.lane.b32.xlu0 %v663, 16
      %v676 = vpop.permute.xlu0 %675
      %677 = vrot.lane.b32.xlu0 %v664, 16
      %v678 = vpop.permute.xlu0 %677
      %v679 = vsel %vm506, %v676, %v678
      %v680 = vsel %vm506, %v678, %v676
      %v681 = vmul.f32 %v680, %v473
      %v682 = vmul.f32 %v679, %v474
      %683 = vst [vmem:[#allocation2 + $0xa0] sm:$0xff] %v681
      %684 = vst [vmem:[#allocation2 + $0xa8] sm:$0xff] %v682
      %685 = vrot.lane.b32.xlu0 %v663, 15
      %v686 = vpop.permute.xlu0 %685
      %687 = vrot.lane.b32.xlu0 %v664, 15
      %v688 = vpop.permute.xlu0 %687
      %v689 = vsel %vm517, %v686, %v688
      %v690 = vsel %vm517, %v688, %v686
      %v691 = vmul.f32 %v690, %v475
      %v692 = vmul.f32 %v689, %v476
      %693 = vst [vmem:[#allocation2 + $0xb0] sm:$0xff] %v691
      %694 = vst [vmem:[#allocation2 + $0xb8] sm:$0xff] %v692
      %695 = vrot.lane.b32.xlu0 %v663, 1
      %v696 = vpop.permute.xlu0 %695
      %697 = vrot.lane.b32.xlu0 %v664, 1
      %v698 = vpop.permute.xlu0 %697
      %v699 = vsel %vm528, %v696, %v698
      %v700 = vsel %vm528, %v698, %v696
      %v701 = vmul.f32 %v700, %v477
      %v702 = vmul.f32 %v699, %v478
      %703 = vst [vmem:[#allocation2 + $0xc0] sm:$0xff] %v701
      %704 = vst [vmem:[#allocation2 + $0xc8] sm:$0xff] %v702
      %705 = vst [vmem:[#allocation2 + $0xd0] sm:$0xff] %v663
      %706 = vst [vmem:[#allocation2 + $0xd8] sm:$0xff] %v664
      %707 = vrot.lane.b32.xlu0 %v663, 127
      %v708 = vpop.permute.xlu0 %707
      %709 = vrot.lane.b32.xlu0 %v664, 127
      %v710 = vpop.permute.xlu0 %709
      %v711 = vsel %vm541, %v708, %v710
      %v712 = vsel %vm541, %v710, %v708
      %v713 = vmul.f32 %v711, %v479
      %v714 = vmul.f32 %v712, %v480
      %715 = vst [vmem:[#allocation2 + $0xe0] sm:$0xff] %v713
      %716 = vst [vmem:[#allocation2 + $0xe8] sm:$0xff] %v714
      %717 = vrot.lane.b32.xlu0 %v663, 113
      %v718 = vpop.permute.xlu0 %717
      %719 = vrot.lane.b32.xlu0 %v664, 113
      %v720 = vpop.permute.xlu0 %719
      %v721 = vsel %vm552, %v718, %v720
      %v722 = vsel %vm552, %v720, %v718
      %v723 = vmul.f32 %v721, %v481
      %v724 = vmul.f32 %v722, %v482
      %725 = vst [vmem:[#allocation2 + $0xf0] sm:$0xff] %v723
      %726 = vst [vmem:[#allocation2 + $0xf8] sm:$0xff] %v724
      %727 = vrot.lane.b32.xlu0 %v663, 112
      %v728 = vpop.permute.xlu0 %727
      %729 = vrot.lane.b32.xlu0 %v664, 112
      %v730 = vpop.permute.xlu0 %729
      %v731 = vsel %vm563, %v728, %v730
      %v732 = vsel %vm563, %v730, %v728
      %v733 = vmul.f32 %v731, %v483
      %v734 = vmul.f32 %v732, %v484
      %735 = vst [vmem:[#allocation2 + $0x100] sm:$0xff] %v733
      %736 = vst [vmem:[#allocation2 + $0x108] sm:$0xff] %v734
      %737 = vrot.lane.b32.xlu0 %v663, 111
      %v738 = vpop.permute.xlu0 %737
      %739 = vrot.lane.b32.xlu0 %v664, 111
      %v740 = vpop.permute.xlu0 %739
      %v741 = vsel %vm574, %v738, %v740
      %v742 = vsel %vm574, %v740, %v738
      %v743 = vmul.f32 %v741, %v485
      %v744 = vmul.f32 %v742, %v486
      %745 = vst [vmem:[#allocation2 + $0x110] sm:$0xff] %v743
      %746 = vst [vmem:[#allocation2 + $0x118] sm:$0xff] %v744
      %v747 = vld [vmem:[#allocation2] sm:$0xff]
      %v748 = vld [vmem:[#allocation2 + $0x8] sm:$0xff]
      %v749 = vld [vmem:[#allocation2 + $0x10] sm:$0xff]
      %v750 = vld [vmem:[#allocation2 + $0x18] sm:$0xff]
      %v751 = vld [vmem:[#allocation2 + $0x20] sm:$0xff]
      %v752 = vld [vmem:[#allocation2 + $0x28] sm:$0xff]
      %v753 = vld [vmem:[#allocation2 + $0x30] sm:$0xff]
      %v754 = vld [vmem:[#allocation2 + $0x38] sm:$0xff]
      %v755 = vld [vmem:[#allocation2 + $0x40] sm:$0xff]
      %v756 = vld [vmem:[#allocation2 + $0x48] sm:$0xff]
      %v757 = vld [vmem:[#allocation2 + $0x50] sm:$0xff]
      %v758 = vld [vmem:[#allocation2 + $0x58] sm:$0xff]
      %v759 = vld [vmem:[#allocation2 + $0x60] sm:$0xff]
      %v760 = vld [vmem:[#allocation2 + $0x68] sm:$0xff]
      %v761 = vld [vmem:[#allocation2 + $0x70] sm:$0xff]
      %v762 = vld [vmem:[#allocation2 + $0x78] sm:$0xff]
      %v763 = vld [vmem:[#allocation2 + $0x80] sm:$0xff]
      %v764 = vld [vmem:[#allocation2 + $0x88] sm:$0xff]
      %v765 = vld [vmem:[#allocation2 + $0x90] sm:$0xff]
      %v766 = vld [vmem:[#allocation2 + $0x98] sm:$0xff]
      %v767 = vld [vmem:[#allocation2 + $0xa0] sm:$0xff]
      %v768 = vld [vmem:[#allocation2 + $0xa8] sm:$0xff]
      %v769 = vld [vmem:[#allocation2 + $0xb0] sm:$0xff]
      %v770 = vld [vmem:[#allocation2 + $0xb8] sm:$0xff]
      %v771 = vld [vmem:[#allocation2 + $0xc0] sm:$0xff]
      %v772 = vld [vmem:[#allocation2 + $0xc8] sm:$0xff]
      %v773 = vld [vmem:[#allocation2 + $0xd0] sm:$0xff]
      %v774 = vld [vmem:[#allocation2 + $0xd8] sm:$0xff]
      %v775 = vld [vmem:[#allocation2 + $0xe0] sm:$0xff]
      %v776 = vld [vmem:[#allocation2 + $0xe8] sm:$0xff]
      %v777 = vld [vmem:[#allocation2 + $0xf0] sm:$0xff]
      %v778 = vld [vmem:[#allocation2 + $0xf8] sm:$0xff]
      %v779 = vld [vmem:[#allocation2 + $0x100] sm:$0xff]
      %v780 = vld [vmem:[#allocation2 + $0x108] sm:$0xff]
      %v781 = vld [vmem:[#allocation2 + $0x110] sm:$0xff]
      %v782 = vld [vmem:[#allocation2 + $0x118] sm:$0xff]
      %v783 = vpack.c.bf16 %v749, %v747
      %v784 = vpack.c.bf16 %v750, %v748
      %v785 = vpack.c.bf16 %v753, %v751
      %v786 = vpack.c.bf16 %v754, %v752
      %v787 = vpack.c.bf16 %v757, %v755
      %v788 = vpack.c.bf16 %v758, %v756
      %v789 = vpack.c.bf16 %v761, %v759
      %v790 = vpack.c.bf16 %v762, %v760
      %v791 = vpack.c.bf16 %v765, %v763
      %v792 = vpack.c.bf16 %v766, %v764
      %v793 = vpack.c.bf16 %v769, %v767
      %v794 = vpack.c.bf16 %v770, %v768
      %v795 = vpack.c.bf16 %v773, %v771
      %v796 = vpack.c.bf16 %v774, %v772
      %v797 = vpack.c.bf16 %v777, %v775
      %v798 = vpack.c.bf16 %v778, %v776
      %v799 = vpack.c.bf16 %v781, %v779
      %v800 = vpack.c.bf16 %v782, %v780
      %v801 = vld [vmem:[%s5] sm:$0xff]
      %v802 = vld [vmem:[%s6] sm:$0xff]
      %804 = vset.pattern.permute.xlu0 0
      %805 = vperm.xlu0 %804, %v802
      %v806 = vpop.permute.xlu0 %805
      %v809 = vunpack.c.l.b16 %v801
      %v810 = vunpack.c.h.b16 %v801
      %v811 = vpack.c.b16 %v809, %v809
      %v812 = vpack.c.b16 %v810, %v810
      %vm814 = vcmask 130048
      %v816 = vsel %vm814, %v812, 0
      %818 = vmatpush.bf16.msra.mxu0 %v797
      %819 = vmatpush.bf16.msra.mxu0 %v795
      %820 = vmatpush.bf16.msra.mxu0 %v793
      %821 = vmatpush.bf16.msra.mxu0 %v791
      %822 = vmatpush.bf16.msra.mxu0 %v789
      %823 = vmatpush.bf16.msra.mxu0 %v787
      %824 = vmatpush.bf16.msra.mxu0 %v785
      %825 = vmatpush.bf16.msra.mxu0 %v783
      %826 = vmatmul.bf16.gmra.mxu0 %v811
      %v827 = vpop.f32.mrf.mxu0
      %v828 = vadd.f32 %v806, %v827
      %v829 = vpop.f32.mrf.mxu0
      %830 = vdwg.mxu0
      %831 = vmatpush.bf16.msra.mxu0 0
      %832 = vmatpush.bf16.msra.mxu0 0
      %833 = vmatpush.bf16.msra.mxu0 0
      %834 = vmatpush.bf16.msra.mxu0 0
      %835 = vmatpush.bf16.msra.mxu0 0
      %836 = vmatpush.bf16.msra.mxu0 0
      %837 = vmatpush.bf16.msra.mxu0 0
      %838 = vmatpush.bf16.msra.mxu0 %v799
      %839 = vmatmul.bf16.gmra.mxu0 %v816
      %v840 = vpop.f32.mrf.mxu0
      %v841 = vadd.f32 %v828, %v840
      %v842 = vpop.f32.mrf.mxu0
      %843 = vdwg.mxu0
      %844 = vmatpush.bf16.msra.mxu0 %v798
      %845 = vmatpush.bf16.msra.mxu0 %v796
      %846 = vmatpush.bf16.msra.mxu0 %v794
      %847 = vmatpush.bf16.msra.mxu0 %v792
      %848 = vmatpush.bf16.msra.mxu0 %v790
      %849 = vmatpush.bf16.msra.mxu0 %v788
      %850 = vmatpush.bf16.msra.mxu0 %v786
      %851 = vmatpush.bf16.msra.mxu0 %v784
      %852 = vmatmul.bf16.gmra.mxu0 %v811
      %v853 = vpop.f32.mrf.mxu0
      %v854 = vadd.f32 %v806, %v853
      %v855 = vpop.f32.mrf.mxu0
      %856 = vdwg.mxu0
      %857 = vmatpush.bf16.msra.mxu0 0
      %858 = vmatpush.bf16.msra.mxu0 0
      %859 = vmatpush.bf16.msra.mxu0 0
      %860 = vmatpush.bf16.msra.mxu0 0
      %861 = vmatpush.bf16.msra.mxu0 0
      %862 = vmatpush.bf16.msra.mxu0 0
      %863 = vmatpush.bf16.msra.mxu0 0
      %864 = vmatpush.bf16.msra.mxu0 %v800
      %865 = vmatmul.bf16.gmra.mxu0 %v816
      %v866 = vpop.f32.mrf.mxu0
      %v867 = vadd.f32 %v854, %v866
      %v868 = vpop.f32.mrf.mxu0
      %869 = vdwg.mxu0
      %vm870 = vcmp.gt.f32.partialorder %v841, 0.0
      %vm871 = vcmp.gt.f32.partialorder %v867, 0.0
      %v872 = vld [vmem:[%s7] sm:$0xff]
      %874 = vset.pattern.permute.xlu0 0
      %875 = vperm.xlu0 %874, %v872
      %v876 = vpop.permute.xlu0 %875
      %v878 = vmul.f32 %v876, %v841
      %v879 = vmul.f32 %v876, %v867
      %v880 = vsel %vm870, %v841, %v878
      %v881 = vsel %vm871, %v867, %v879
      %882 = vrot.lane.b32.xlu0 %v880, 17
      %v883 = vpop.permute.xlu0 %882
      %884 = vrot.lane.b32.xlu0 %v881, 17
      %v885 = vpop.permute.xlu0 %884
      %v886 = vsel %vm495, %v883, %v885
      %v887 = vsel %vm495, %v885, %v883
      %v888 = vmul.f32 %v887, %v471
      %v889 = vmul.f32 %v886, %v472
      %890 = vst [vmem:[#allocation2 + $0x120] sm:$0xff] %v888
      %891 = vst [vmem:[#allocation2 + $0x128] sm:$0xff] %v889
      %892 = vrot.lane.b32.xlu0 %v880, 16
      %v893 = vpop.permute.xlu0 %892
      %894 = vrot.lane.b32.xlu0 %v881, 16
      %v895 = vpop.permute.xlu0 %894
      %v896 = vsel %vm506, %v893, %v895
      %v897 = vsel %vm506, %v895, %v893
      %v898 = vmul.f32 %v897, %v473
      %v899 = vmul.f32 %v896, %v474
      %900 = vst [vmem:[#allocation2 + $0x130] sm:$0xff] %v898
      %901 = vst [vmem:[#allocation2 + $0x138] sm:$0xff] %v899
      %902 = vrot.lane.b32.xlu0 %v880, 15
      %v903 = vpop.permute.xlu0 %902
      %904 = vrot.lane.b32.xlu0 %v881, 15
      %v905 = vpop.permute.xlu0 %904
      %v906 = vsel %vm517, %v903, %v905
      %v907 = vsel %vm517, %v905, %v903
      %v908 = vmul.f32 %v907, %v475
      %v909 = vmul.f32 %v906, %v476
      %910 = vst [vmem:[#allocation2 + $0x140] sm:$0xff] %v908
      %911 = vst [vmem:[#allocation2 + $0x148] sm:$0xff] %v909
      %912 = vrot.lane.b32.xlu0 %v880, 1
      %v913 = vpop.permute.xlu0 %912
      %914 = vrot.lane.b32.xlu0 %v881, 1
      %v915 = vpop.permute.xlu0 %914
      %v916 = vsel %vm528, %v913, %v915
      %v917 = vsel %vm528, %v915, %v913
      %v918 = vmul.f32 %v917, %v477
      %v919 = vmul.f32 %v916, %v478
      %920 = vst [vmem:[#allocation2 + $0x150] sm:$0xff] %v918
      %921 = vst [vmem:[#allocation2 + $0x158] sm:$0xff] %v919
      %922 = vst [vmem:[#allocation2 + $0x160] sm:$0xff] %v880
      %923 = vst [vmem:[#allocation2 + $0x168] sm:$0xff] %v881
      %924 = vrot.lane.b32.xlu0 %v880, 127
      %v925 = vpop.permute.xlu0 %924
      %926 = vrot.lane.b32.xlu0 %v881, 127
      %v927 = vpop.permute.xlu0 %926
      %v928 = vsel %vm541, %v925, %v927
      %v929 = vsel %vm541, %v927, %v925
      %v930 = vmul.f32 %v928, %v479
      %v931 = vmul.f32 %v929, %v480
      %932 = vst [vmem:[#allocation2 + $0x170] sm:$0xff] %v930
      %933 = vst [vmem:[#allocation2 + $0x178] sm:$0xff] %v931
      %934 = vrot.lane.b32.xlu0 %v880, 113
      %v935 = vpop.permute.xlu0 %934
      %936 = vrot.lane.b32.xlu0 %v881, 113
      %v937 = vpop.permute.xlu0 %936
      %v938 = vsel %vm552, %v935, %v937
      %v939 = vsel %vm552, %v937, %v935
      %v940 = vmul.f32 %v938, %v481
      %v941 = vmul.f32 %v939, %v482
      %942 = vst [vmem:[#allocation2 + $0x180] sm:$0xff] %v940
      %943 = vst [vmem:[#allocation2 + $0x188] sm:$0xff] %v941
      %944 = vrot.lane.b32.xlu0 %v880, 112
      %v945 = vpop.permute.xlu0 %944
      %946 = vrot.lane.b32.xlu0 %v881, 112
      %v947 = vpop.permute.xlu0 %946
      %v948 = vsel %vm563, %v945, %v947
      %v949 = vsel %vm563, %v947, %v945
      %v950 = vmul.f32 %v948, %v483
      %v951 = vmul.f32 %v949, %v484
      %952 = vst [vmem:[#allocation2 + $0x190] sm:$0xff] %v950
      %953 = vst [vmem:[#allocation2 + $0x198] sm:$0xff] %v951
      %954 = vrot.lane.b32.xlu0 %v880, 111
      %v955 = vpop.permute.xlu0 %954
      %956 = vrot.lane.b32.xlu0 %v881, 111
      %v957 = vpop.permute.xlu0 %956
      %v958 = vsel %vm574, %v955, %v957
      %v959 = vsel %vm574, %v957, %v955
      %v960 = vmul.f32 %v958, %v485
      %v961 = vmul.f32 %v959, %v486
      %962 = vst [vmem:[#allocation2 + $0x1a0] sm:$0xff] %v960
      %963 = vst [vmem:[#allocation2 + $0x1a8] sm:$0xff] %v961
      %v964 = vld [vmem:[#allocation2] sm:$0xff]
      %v965 = vld [vmem:[#allocation2 + $0x8] sm:$0xff]
      %v966 = vld [vmem:[#allocation2 + $0x10] sm:$0xff]
      %v967 = vld [vmem:[#allocation2 + $0x18] sm:$0xff]
      %v968 = vld [vmem:[#allocation2 + $0x20] sm:$0xff]
      %v969 = vld [vmem:[#allocation2 + $0x28] sm:$0xff]
      %v970 = vld [vmem:[#allocation2 + $0x30] sm:$0xff]
      %v971 = vld [vmem:[#allocation2 + $0x38] sm:$0xff]
      %v972 = vld [vmem:[#allocation2 + $0x40] sm:$0xff]
      %v973 = vld [vmem:[#allocation2 + $0x48] sm:$0xff]
      %v974 = vld [vmem:[#allocation2 + $0x50] sm:$0xff]
      %v975 = vld [vmem:[#allocation2 + $0x58] sm:$0xff]
      %v976 = vld [vmem:[#allocation2 + $0x60] sm:$0xff]
      %v977 = vld [vmem:[#allocation2 + $0x68] sm:$0xff]
      %v978 = vld [vmem:[#allocation2 + $0x70] sm:$0xff]
      %v979 = vld [vmem:[#allocation2 + $0x78] sm:$0xff]
      %v980 = vld [vmem:[#allocation2 + $0x80] sm:$0xff]
      %v981 = vld [vmem:[#allocation2 + $0x88] sm:$0xff]
      %v982 = vld [vmem:[#allocation2 + $0x90] sm:$0xff]
      %v983 = vld [vmem:[#allocation2 + $0x98] sm:$0xff]
      %v984 = vld [vmem:[#allocation2 + $0xa0] sm:$0xff]
      %v985 = vld [vmem:[#allocation2 + $0xa8] sm:$0xff]
      %v986 = vld [vmem:[#allocation2 + $0xb0] sm:$0xff]
      %v987 = vld [vmem:[#allocation2 + $0xb8] sm:$0xff]
      %v988 = vld [vmem:[#allocation2 + $0xc0] sm:$0xff]
      %v989 = vld [vmem:[#allocation2 + $0xc8] sm:$0xff]
      %v990 = vld [vmem:[#allocation2 + $0xd0] sm:$0xff]
      %v991 = vld [vmem:[#allocation2 + $0xd8] sm:$0xff]
      %v992 = vld [vmem:[#allocation2 + $0xe0] sm:$0xff]
      %v993 = vld [vmem:[#allocation2 + $0xe8] sm:$0xff]
      %v994 = vld [vmem:[#allocation2 + $0xf0] sm:$0xff]
      %v995 = vld [vmem:[#allocation2 + $0xf8] sm:$0xff]
      %v996 = vld [vmem:[#allocation2 + $0x100] sm:$0xff]
      %v997 = vld [vmem:[#allocation2 + $0x108] sm:$0xff]
      %v998 = vld [vmem:[#allocation2 + $0x110] sm:$0xff]
      %v999 = vld [vmem:[#allocation2 + $0x118] sm:$0xff]
      %v1000 = vld [vmem:[#allocation2 + $0x120] sm:$0xff]
      %v1001 = vld [vmem:[#allocation2 + $0x128] sm:$0xff]
      %v1002 = vld [vmem:[#allocation2 + $0x130] sm:$0xff]
      %v1003 = vld [vmem:[#allocation2 + $0x138] sm:$0xff]
      %v1004 = vld [vmem:[#allocation2 + $0x140] sm:$0xff]
      %v1005 = vld [vmem:[#allocation2 + $0x148] sm:$0xff]
      %v1006 = vld [vmem:[#allocation2 + $0x150] sm:$0xff]
      %v1007 = vld [vmem:[#allocation2 + $0x158] sm:$0xff]
      %v1008 = vld [vmem:[#allocation2 + $0x160] sm:$0xff]
      %v1009 = vld [vmem:[#allocation2 + $0x168] sm:$0xff]
      %v1010 = vld [vmem:[#allocation2 + $0x170] sm:$0xff]
      %v1011 = vld [vmem:[#allocation2 + $0x178] sm:$0xff]
      %v1012 = vld [vmem:[#allocation2 + $0x180] sm:$0xff]
      %v1013 = vld [vmem:[#allocation2 + $0x188] sm:$0xff]
      %v1014 = vld [vmem:[#allocation2 + $0x190] sm:$0xff]
      %v1015 = vld [vmem:[#allocation2 + $0x198] sm:$0xff]
      %v1016 = vld [vmem:[#allocation2 + $0x1a0] sm:$0xff]
      %v1017 = vld [vmem:[#allocation2 + $0x1a8] sm:$0xff]
      %v1018 = vpack.c.bf16 %v966, %v964
      %v1019 = vpack.c.bf16 %v967, %v965
      %v1020 = vpack.c.bf16 %v970, %v968
      %v1021 = vpack.c.bf16 %v971, %v969
      %v1022 = vpack.c.bf16 %v974, %v972
      %v1023 = vpack.c.bf16 %v975, %v973
      %v1024 = vpack.c.bf16 %v978, %v976
      %v1025 = vpack.c.bf16 %v979, %v977
      %v1026 = vpack.c.bf16 %v982, %v980
      %v1027 = vpack.c.bf16 %v983, %v981
      %v1028 = vpack.c.bf16 %v986, %v984
      %v1029 = vpack.c.bf16 %v987, %v985
      %v1030 = vpack.c.bf16 %v990, %v988
      %v1031 = vpack.c.bf16 %v991, %v989
      %v1032 = vpack.c.bf16 %v994, %v992
      %v1033 = vpack.c.bf16 %v995, %v993
      %v1034 = vpack.c.bf16 %v998, %v996
      %v1035 = vpack.c.bf16 %v999, %v997
      %v1036 = vpack.c.bf16 %v1002, %v1000
      %v1037 = vpack.c.bf16 %v1003, %v1001
      %v1038 = vpack.c.bf16 %v1006, %v1004
      %v1039 = vpack.c.bf16 %v1007, %v1005
      %v1040 = vpack.c.bf16 %v1010, %v1008
      %v1041 = vpack.c.bf16 %v1011, %v1009
      %v1042 = vpack.c.bf16 %v1014, %v1012
      %v1043 = vpack.c.bf16 %v1015, %v1013
      %v1044 = vpack.c.bf16 %v1016, %v1016
      %v1045 = vpack.c.bf16 %v1017, %v1017
      %v1046 = vld [vmem:[%s8] sm:$0xff]
      %v1047 = vld [vmem:[%s9] sm:$0xff]
      %1049 = vset.pattern.permute.xlu0 0
      %1050 = vperm.xlu0 %1049, %v1047
      %v1051 = vpop.permute.xlu0 %1050
      %v1054 = vunpack.c.l.b16 %v1046
      %v1055 = vunpack.c.h.b16 %v1046
      %v1056 = vpack.c.b16 %v1054, %v1054
      %v1057 = vpack.c.b16 %v1055, %v1055
      %vm1059 = vcmask 719872
      %v1061 = vsel %vm1059, %v1057, 0
      %v1064 = vsel %vm620, %v1044, 0
      %v1067 = vsel %vm620, %v1045, 0
      %1069 = vmatpush.bf16.msra.mxu0 %v1032
      %1070 = vmatpush.bf16.msra.mxu0 %v1030
      %1071 = vmatpush.bf16.msra.mxu0 %v1028
      %1072 = vmatpush.bf16.msra.mxu0 %v1026
      %1073 = vmatpush.bf16.msra.mxu0 %v1024
      %1074 = vmatpush.bf16.msra.mxu0 %v1022
      %1075 = vmatpush.bf16.msra.mxu0 %v1020
      %1076 = vmatpush.bf16.msra.mxu0 %v1018
      %1077 = vmatmul.bf16.gmra.mxu0 %v1056
      %v1078 = vpop.f32.mrf.mxu0
      %v1079 = vadd.f32 %v1051, %v1078
      %v1080 = vpop.f32.mrf.mxu0
      %1081 = vdwg.mxu0
      %1082 = vmatpush.bf16.msra.mxu0 0
      %1083 = vmatpush.bf16.msra.mxu0 0
      %1084 = vmatpush.bf16.msra.mxu0 %v1064
      %1085 = vmatpush.bf16.msra.mxu0 %v1042
      %1086 = vmatpush.bf16.msra.mxu0 %v1040
      %1087 = vmatpush.bf16.msra.mxu0 %v1038
      %1088 = vmatpush.bf16.msra.mxu0 %v1036
      %1089 = vmatpush.bf16.msra.mxu0 %v1034
      %1090 = vmatmul.bf16.gmra.mxu0 %v1061
      %v1091 = vpop.f32.mrf.mxu0
      %v1092 = vadd.f32 %v1079, %v1091
      %v1093 = vpop.f32.mrf.mxu0
      %1094 = vdwg.mxu0
      %1095 = vmatpush.bf16.msra.mxu0 %v1033
      %1096 = vmatpush.bf16.msra.mxu0 %v1031
      %1097 = vmatpush.bf16.msra.mxu0 %v1029
      %1098 = vmatpush.bf16.msra.mxu0 %v1027
      %1099 = vmatpush.bf16.msra.mxu0 %v1025
      %1100 = vmatpush.bf16.msra.mxu0 %v1023
      %1101 = vmatpush.bf16.msra.mxu0 %v1021
      %1102 = vmatpush.bf16.msra.mxu0 %v1019
      %1103 = vmatmul.bf16.gmra.mxu0 %v1056
      %v1104 = vpop.f32.mrf.mxu0
      %v1105 = vadd.f32 %v1051, %v1104
      %v1106 = vpop.f32.mrf.mxu0
      %1107 = vdwg.mxu0
      %1108 = vmatpush.bf16.msra.mxu0 0
      %1109 = vmatpush.bf16.msra.mxu0 0
      %1110 = vmatpush.bf16.msra.mxu0 %v1067
      %1111 = vmatpush.bf16.msra.mxu0 %v1043
      %1112 = vmatpush.bf16.msra.mxu0 %v1041
      %1113 = vmatpush.bf16.msra.mxu0 %v1039
      %1114 = vmatpush.bf16.msra.mxu0 %v1037
      %1115 = vmatpush.bf16.msra.mxu0 %v1035
      %1116 = vmatmul.bf16.gmra.mxu0 %v1061
      %v1117 = vpop.f32.mrf.mxu0
      %v1118 = vadd.f32 %v1105, %v1117
      %v1119 = vpop.f32.mrf.mxu0
      %1120 = vdwg.mxu0
      %vm1121 = vcmp.gt.f32.partialorder %v1092, 0.0
      %vm1122 = vcmp.gt.f32.partialorder %v1118, 0.0
      %v1123 = vld [vmem:[%s10] sm:$0xff]
      %1125 = vset.pattern.permute.xlu0 0
      %1126 = vperm.xlu0 %1125, %v1123
      %v1127 = vpop.permute.xlu0 %1126
      %v1129 = vmul.f32 %v1127, %v1092
      %v1130 = vmul.f32 %v1127, %v1118
      %v1131 = vsel %vm1121, %v1092, %v1129
      %v1132 = vsel %vm1122, %v1118, %v1130
      %1133 = vrot.lane.b32.xlu0 %v1131, 17
      %v1134 = vpop.permute.xlu0 %1133
      %1135 = vrot.lane.b32.xlu0 %v1132, 17
      %v1136 = vpop.permute.xlu0 %1135
      %v1137 = vsel %vm495, %v1134, %v1136
      %v1138 = vsel %vm495, %v1136, %v1134
      %v1139 = vmul.f32 %v1138, %v471
      %v1140 = vmul.f32 %v1137, %v472
      %1141 = vst [vmem:[#allocation2 + $0x1b0] sm:$0xff] %v1139
      %1142 = vst [vmem:[#allocation2 + $0x1b8] sm:$0xff] %v1140
      %1143 = vrot.lane.b32.xlu0 %v1131, 16
      %v1144 = vpop.permute.xlu0 %1143
      %1145 = vrot.lane.b32.xlu0 %v1132, 16
      %v1146 = vpop.permute.xlu0 %1145
      %v1147 = vsel %vm506, %v1144, %v1146
      %v1148 = vsel %vm506, %v1146, %v1144
      %v1149 = vmul.f32 %v1148, %v473
      %v1150 = vmul.f32 %v1147, %v474
      %1151 = vst [vmem:[#allocation2 + $0x1c0] sm:$0xff] %v1149
      %1152 = vst [vmem:[#allocation2 + $0x1c8] sm:$0xff] %v1150
      %1153 = vrot.lane.b32.xlu0 %v1131, 15
      %v1154 = vpop.permute.xlu0 %1153
      %1155 = vrot.lane.b32.xlu0 %v1132, 15
      %v1156 = vpop.permute.xlu0 %1155
      %v1157 = vsel %vm517, %v1154, %v1156
      %v1158 = vsel %vm517, %v1156, %v1154
      %v1159 = vmul.f32 %v1158, %v475
      %v1160 = vmul.f32 %v1157, %v476
      %1161 = vst [vmem:[#allocation2 + $0x1d0] sm:$0xff] %v1159
      %1162 = vst [vmem:[#allocation2 + $0x1d8] sm:$0xff] %v1160
      %1163 = vrot.lane.b32.xlu0 %v1131, 1
      %v1164 = vpop.permute.xlu0 %1163
      %1165 = vrot.lane.b32.xlu0 %v1132, 1
      %v1166 = vpop.permute.xlu0 %1165
      %v1167 = vsel %vm528, %v1164, %v1166
      %v1168 = vsel %vm528, %v1166, %v1164
      %v1169 = vmul.f32 %v1168, %v477
      %v1170 = vmul.f32 %v1167, %v478
      %1171 = vst [vmem:[#allocation2 + $0x1e0] sm:$0xff] %v1169
      %1172 = vst [vmem:[#allocation2 + $0x1e8] sm:$0xff] %v1170
      %1173 = vst [vmem:[#allocation2 + $0x1f0] sm:$0xff] %v1131
      %1174 = vst [vmem:[#allocation2 + $0x1f8] sm:$0xff] %v1132
      %1175 = vrot.lane.b32.xlu0 %v1131, 127
      %v1176 = vpop.permute.xlu0 %1175
      %1177 = vrot.lane.b32.xlu0 %v1132, 127
      %v1178 = vpop.permute.xlu0 %1177
      %v1179 = vsel %vm541, %v1176, %v1178
      %v1180 = vsel %vm541, %v1178, %v1176
      %v1181 = vmul.f32 %v1179, %v479
      %v1182 = vmul.f32 %v1180, %v480
      %1183 = vst [vmem:[#allocation2 + $0x200] sm:$0xff] %v1181
      %1184 = vst [vmem:[#allocation2 + $0x208] sm:$0xff] %v1182
      %1185 = vrot.lane.b32.xlu0 %v1131, 113
      %v1186 = vpop.permute.xlu0 %1185
      %1187 = vrot.lane.b32.xlu0 %v1132, 113
      %v1188 = vpop.permute.xlu0 %1187
      %v1189 = vsel %vm552, %v1186, %v1188
      %v1190 = vsel %vm552, %v1188, %v1186
      %v1191 = vmul.f32 %v1189, %v481
      %v1192 = vmul.f32 %v1190, %v482
      %1193 = vst [vmem:[#allocation2 + $0x210] sm:$0xff] %v1191
      %1194 = vst [vmem:[#allocation2 + $0x218] sm:$0xff] %v1192
      %1195 = vrot.lane.b32.xlu0 %v1131, 112
      %v1196 = vpop.permute.xlu0 %1195
      %1197 = vrot.lane.b32.xlu0 %v1132, 112
      %v1198 = vpop.permute.xlu0 %1197
      %v1199 = vsel %vm563, %v1196, %v1198
      %v1200 = vsel %vm563, %v1198, %v1196
      %v1201 = vmul.f32 %v1199, %v483
      %v1202 = vmul.f32 %v1200, %v484
      %1203 = vst [vmem:[#allocation2 + $0x220] sm:$0xff] %v1201
      %1204 = vst [vmem:[#allocation2 + $0x228] sm:$0xff] %v1202
      %1205 = vrot.lane.b32.xlu0 %v1131, 111
      %v1206 = vpop.permute.xlu0 %1205
      %1207 = vrot.lane.b32.xlu0 %v1132, 111
      %v1208 = vpop.permute.xlu0 %1207
      %v1209 = vsel %vm574, %v1206, %v1208
      %v1210 = vsel %vm574, %v1208, %v1206
      %v1211 = vmul.f32 %v1209, %v485
      %v1212 = vmul.f32 %v1210, %v486
      %1213 = vst [vmem:[#allocation2 + $0x230] sm:$0xff] %v1211
      %1214 = vst [vmem:[#allocation2 + $0x238] sm:$0xff] %v1212
      %v1215 = vld [vmem:[#allocation2] sm:$0xff]
      %v1216 = vld [vmem:[#allocation2 + $0x8] sm:$0xff]
      %v1217 = vld [vmem:[#allocation2 + $0x10] sm:$0xff]
      %v1218 = vld [vmem:[#allocation2 + $0x18] sm:$0xff]
      %v1219 = vld [vmem:[#allocation2 + $0x20] sm:$0xff]
      %v1220 = vld [vmem:[#allocation2 + $0x28] sm:$0xff]
      %v1221 = vld [vmem:[#allocation2 + $0x30] sm:$0xff]
      %v1222 = vld [vmem:[#allocation2 + $0x38] sm:$0xff]
      %v1223 = vld [vmem:[#allocation2 + $0x40] sm:$0xff]
      %v1224 = vld [vmem:[#allocation2 + $0x48] sm:$0xff]
      %v1225 = vld [vmem:[#allocation2 + $0x50] sm:$0xff]
      %v1226 = vld [vmem:[#allocation2 + $0x58] sm:$0xff]
      %v1227 = vld [vmem:[#allocation2 + $0x60] sm:$0xff]
      %v1228 = vld [vmem:[#allocation2 + $0x68] sm:$0xff]
      %v1229 = vld [vmem:[#allocation2 + $0x70] sm:$0xff]
      %v1230 = vld [vmem:[#allocation2 + $0x78] sm:$0xff]
      %v1231 = vld [vmem:[#allocation2 + $0x80] sm:$0xff]
      %v1232 = vld [vmem:[#allocation2 + $0x88] sm:$0xff]
      %v1233 = vld [vmem:[#allocation2 + $0x90] sm:$0xff]
      %v1234 = vld [vmem:[#allocation2 + $0x98] sm:$0xff]
      %v1235 = vld [vmem:[#allocation2 + $0xa0] sm:$0xff]
      %v1236 = vld [vmem:[#allocation2 + $0xa8] sm:$0xff]
      %v1237 = vld [vmem:[#allocation2 + $0xb0] sm:$0xff]
      %v1238 = vld [vmem:[#allocation2 + $0xb8] sm:$0xff]
      %v1239 = vld [vmem:[#allocation2 + $0xc0] sm:$0xff]
      %v1240 = vld [vmem:[#allocation2 + $0xc8] sm:$0xff]
      %v1241 = vld [vmem:[#allocation2 + $0xd0] sm:$0xff]
      %v1242 = vld [vmem:[#allocation2 + $0xd8] sm:$0xff]
      %v1243 = vld [vmem:[#allocation2 + $0xe0] sm:$0xff]
      %v1244 = vld [vmem:[#allocation2 + $0xe8] sm:$0xff]
      %v1245 = vld [vmem:[#allocation2 + $0xf0] sm:$0xff]
      %v1246 = vld [vmem:[#allocation2 + $0xf8] sm:$0xff]
      %v1247 = vld [vmem:[#allocation2 + $0x100] sm:$0xff]
      %v1248 = vld [vmem:[#allocation2 + $0x108] sm:$0xff]
      %v1249 = vld [vmem:[#allocation2 + $0x110] sm:$0xff]
      %v1250 = vld [vmem:[#allocation2 + $0x118] sm:$0xff]
      %v1251 = vld [vmem:[#allocation2 + $0x120] sm:$0xff]
      %v1252 = vld [vmem:[#allocation2 + $0x128] sm:$0xff]
      %v1253 = vld [vmem:[#allocation2 + $0x130] sm:$0xff]
      %v1254 = vld [vmem:[#allocation2 + $0x138] sm:$0xff]
      %v1255 = vld [vmem:[#allocation2 + $0x140] sm:$0xff]
      %v1256 = vld [vmem:[#allocation2 + $0x148] sm:$0xff]
      %v1257 = vld [vmem:[#allocation2 + $0x150] sm:$0xff]
      %v1258 = vld [vmem:[#allocation2 + $0x158] sm:$0xff]
      %v1259 = vld [vmem:[#allocation2 + $0x160] sm:$0xff]
      %v1260 = vld [vmem:[#allocation2 + $0x168] sm:$0xff]
      %v1261 = vld [vmem:[#allocation2 + $0x170] sm:$0xff]
      %v1262 = vld [vmem:[#allocation2 + $0x178] sm:$0xff]
      %v1263 = vld [vmem:[#allocation2 + $0x180] sm:$0xff]
      %v1264 = vld [vmem:[#allocation2 + $0x188] sm:$0xff]
      %v1265 = vld [vmem:[#allocation2 + $0x190] sm:$0xff]
      %v1266 = vld [vmem:[#allocation2 + $0x198] sm:$0xff]
      %v1267 = vld [vmem:[#allocation2 + $0x1a0] sm:$0xff]
      %v1268 = vld [vmem:[#allocation2 + $0x1a8] sm:$0xff]
      %v1269 = vld [vmem:[#allocation2 + $0x1b0] sm:$0xff]
      %v1270 = vld [vmem:[#allocation2 + $0x1b8] sm:$0xff]
      %v1271 = vld [vmem:[#allocation2 + $0x1c0] sm:$0xff]
      %v1272 = vld [vmem:[#allocation2 + $0x1c8] sm:$0xff]
      %v1273 = vld [vmem:[#allocation2 + $0x1d0] sm:$0xff]
      %v1274 = vld [vmem:[#allocation2 + $0x1d8] sm:$0xff]
      %v1275 = vld [vmem:[#allocation2 + $0x1e0] sm:$0xff]
      %v1276 = vld [vmem:[#allocation2 + $0x1e8] sm:$0xff]
      %v1277 = vld [vmem:[#allocation2 + $0x1f0] sm:$0xff]
      %v1278 = vld [vmem:[#allocation2 + $0x1f8] sm:$0xff]
      %v1279 = vld [vmem:[#allocation2 + $0x200] sm:$0xff]
      %v1280 = vld [vmem:[#allocation2 + $0x208] sm:$0xff]
      %v1281 = vld [vmem:[#allocation2 + $0x210] sm:$0xff]
      %v1282 = vld [vmem:[#allocation2 + $0x218] sm:$0xff]
      %v1283 = vld [vmem:[#allocation2 + $0x220] sm:$0xff]
      %v1284 = vld [vmem:[#allocation2 + $0x228] sm:$0xff]
      %v1285 = vld [vmem:[#allocation2 + $0x230] sm:$0xff]
      %v1286 = vld [vmem:[#allocation2 + $0x238] sm:$0xff]
      %v1287 = vpack.c.bf16 %v1217, %v1215
      %v1288 = vpack.c.bf16 %v1218, %v1216
      %v1289 = vpack.c.bf16 %v1221, %v1219
      %v1290 = vpack.c.bf16 %v1222, %v1220
      %v1291 = vpack.c.bf16 %v1225, %v1223
      %v1292 = vpack.c.bf16 %v1226, %v1224
      %v1293 = vpack.c.bf16 %v1229, %v1227
      %v1294 = vpack.c.bf16 %v1230, %v1228
      %v1295 = vpack.c.bf16 %v1233, %v1231
      %v1296 = vpack.c.bf16 %v1234, %v1232
      %v1297 = vpack.c.bf16 %v1237, %v1235
      %v1298 = vpack.c.bf16 %v1238, %v1236
      %v1299 = vpack.c.bf16 %v1241, %v1239
      %v1300 = vpack.c.bf16 %v1242, %v1240
      %v1301 = vpack.c.bf16 %v1245, %v1243
      %v1302 = vpack.c.bf16 %v1246, %v1244
      %v1303 = vpack.c.bf16 %v1249, %v1247
      %v1304 = vpack.c.bf16 %v1250, %v1248
      %v1305 = vpack.c.bf16 %v1253, %v1251
      %v1306 = vpack.c.bf16 %v1254, %v1252
      %v1307 = vpack.c.bf16 %v1257, %v1255
      %v1308 = vpack.c.bf16 %v1258, %v1256
      %v1309 = vpack.c.bf16 %v1261, %v1259
      %v1310 = vpack.c.bf16 %v1262, %v1260
      %v1311 = vpack.c.bf16 %v1265, %v1263
      %v1312 = vpack.c.bf16 %v1266, %v1264
      %v1313 = vpack.c.bf16 %v1269, %v1267
      %v1314 = vpack.c.bf16 %v1270, %v1268
      %v1315 = vpack.c.bf16 %v1273, %v1271
      %v1316 = vpack.c.bf16 %v1274, %v1272
      %v1317 = vpack.c.bf16 %v1277, %v1275
      %v1318 = vpack.c.bf16 %v1278, %v1276
      %v1319 = vpack.c.bf16 %v1281, %v1279
      %v1320 = vpack.c.bf16 %v1282, %v1280
      %v1321 = vpack.c.bf16 %v1285, %v1283
      %v1322 = vpack.c.bf16 %v1286, %v1284
      %v1323 = vld [vmem:[%s11] sm:$0x3f]
      %v1324 = vld [vmem:[%s12] sm:$0xf]
      %1326 = vset.pattern.permute.xlu0 0
      %1327 = vperm.xlu0 %1326, %v1324
      %v1328 = vpop.permute.xlu0 %1327
      %1331 = vst [vmem:[#allocation1] ss:$4 sm:$0xff] %v1323
      %v1332 = vld.sshfl [vmem:[#allocation1] sm:$0xff pattern:$0x73625140]
      %v1333 = vld.sshfl [vmem:[#allocation1 + $0x8] sm:$0xff pattern:$0x73625140]
      %v1334 = vld.sshfl [vmem:[#allocation1 + $0x10] sm:$0xff pattern:$0x73625140]
      %vm1337 = vcmask 261120
      %v1338 = vsel %vm1337, %v1334, 0
      %1340 = vmatpush.bf16.msra.mxu0 %v1301
      %1341 = vmatpush.bf16.msra.mxu0 %v1299
      %1342 = vmatpush.bf16.msra.mxu0 %v1297
      %1343 = vmatpush.bf16.msra.mxu0 %v1295
      %1344 = vmatpush.bf16.msra.mxu0 %v1293
      %1345 = vmatpush.bf16.msra.mxu0 %v1291
      %1346 = vmatpush.bf16.msra.mxu0 %v1289
      %1347 = vmatpush.bf16.msra.mxu0 %v1287
      %1348 = vmatmul.bf16.gmra.mxu0 %v1332
      %v1349 = vpop.f32.mrf.mxu0
      %v1350 = vadd.f32 %v1328, %v1349
      %v1351 = vpop.f32.mrf.mxu0
      %1352 = vdwg.mxu0
      %1353 = vmatpush.bf16.msra.mxu0 %v1317
      %1354 = vmatpush.bf16.msra.mxu0 %v1315
      %1355 = vmatpush.bf16.msra.mxu0 %v1313
      %1356 = vmatpush.bf16.msra.mxu0 %v1311
      %1357 = vmatpush.bf16.msra.mxu0 %v1309
      %1358 = vmatpush.bf16.msra.mxu0 %v1307
      %1359 = vmatpush.bf16.msra.mxu0 %v1305
      %1360 = vmatpush.bf16.msra.mxu0 %v1303
      %1361 = vmatmul.bf16.gmra.mxu0 %v1333
      %v1362 = vpop.f32.mrf.mxu0
      %v1363 = vadd.f32 %v1350, %v1362
      %v1364 = vpop.f32.mrf.mxu0
      %1365 = vdwg.mxu0
      %1366 = vmatpush.bf16.msra.mxu0 0
      %1367 = vmatpush.bf16.msra.mxu0 0
      %1368 = vmatpush.bf16.msra.mxu0 0
      %1369 = vmatpush.bf16.msra.mxu0 0
      %1370 = vmatpush.bf16.msra.mxu0 0
      %1371 = vmatpush.bf16.msra.mxu0 0
      %1372 = vmatpush.bf16.msra.mxu0 %v1321
      %1373 = vmatpush.bf16.msra.mxu0 %v1319
      %1374 = vmatmul.bf16.gmra.mxu0 %v1338
      %v1375 = vpop.f32.mrf.mxu0
      %v1376 = vadd.f32 %v1363, %v1375
      %v1377 = vpop.f32.mrf.mxu0
      %1378 = vdwg.mxu0
      %1379 = vmatpush.bf16.msra.mxu0 %v1302
      %1380 = vmatpush.bf16.msra.mxu0 %v1300
      %1381 = vmatpush.bf16.msra.mxu0 %v1298
      %1382 = vmatpush.bf16.msra.mxu0 %v1296
      %1383 = vmatpush.bf16.msra.mxu0 %v1294
      %1384 = vmatpush.bf16.msra.mxu0 %v1292
      %1385 = vmatpush.bf16.msra.mxu0 %v1290
      %1386 = vmatpush.bf16.msra.mxu0 %v1288
      %1387 = vmatmul.bf16.gmra.mxu0 %v1332
      %v1388 = vpop.f32.mrf.mxu0
      %v1389 = vadd.f32 %v1328, %v1388
      %v1390 = vpop.f32.mrf.mxu0
      %1391 = vdwg.mxu0
      %1392 = vmatpush.bf16.msra.mxu0 %v1318
      %1393 = vmatpush.bf16.msra.mxu0 %v1316
      %1394 = vmatpush.bf16.msra.mxu0 %v1314
      %1395 = vmatpush.bf16.msra.mxu0 %v1312
      %1396 = vmatpush.bf16.msra.mxu0 %v1310
      %1397 = vmatpush.bf16.msra.mxu0 %v1308
      %1398 = vmatpush.bf16.msra.mxu0 %v1306
      %1399 = vmatpush.bf16.msra.mxu0 %v1304
      %1400 = vmatmul.bf16.gmra.mxu0 %v1333
      %v1401 = vpop.f32.mrf.mxu0
      %v1402 = vadd.f32 %v1389, %v1401
      %v1403 = vpop.f32.mrf.mxu0
      %1404 = vdwg.mxu0
      %1405 = vmatpush.bf16.msra.mxu0 0
      %1406 = vmatpush.bf16.msra.mxu0 0
      %1407 = vmatpush.bf16.msra.mxu0 0
      %1408 = vmatpush.bf16.msra.mxu0 0
      %1409 = vmatpush.bf16.msra.mxu0 0
      %1410 = vmatpush.bf16.msra.mxu0 0
      %1411 = vmatpush.bf16.msra.mxu0 %v1322
      %1412 = vmatpush.bf16.msra.mxu0 %v1320
      %1413 = vmatmul.bf16.gmra.mxu0 %v1338
      %v1414 = vpop.f32.mrf.mxu0
      %v1415 = vadd.f32 %v1402, %v1414
      %v1416 = vpop.f32.mrf.mxu0
      %1417 = vdwg.mxu0
      %vm1418 = vcmp.gt.f32.partialorder %v1376, 0.0
      %vm1419 = vcmp.gt.f32.partialorder %v1415, 0.0
      %v1420 = vld [vmem:[%s13] sm:$0xf]
      %1422 = vset.pattern.permute.xlu0 0
      %1423 = vperm.xlu0 %1422, %v1420
      %v1424 = vpop.permute.xlu0 %1423
      %v1426 = vmul.f32 %v1424, %v1376
      %v1427 = vmul.f32 %v1424, %v1415
      %v1428 = vsel %vm1418, %v1376, %v1426
      %v1429 = vsel %vm1419, %v1415, %v1427
      %v1430 = vadd.f32 %v1428, %v487
      %v1431 = vadd.f32 %v1429, %v488
      %v1434 = vrot.slane %v1431, 4
      %v1435 = vsel %vm620, %v1430, %v1434
      %1437 = vst [vmem:[%s467] sm:$0xff] %v1435
      %p1438 = scmp.lt.s32.totalorder %s25, 1
      %s1439 = scalar_select %p1438, %s25, 1
      %s1440 = smul.addr %s1439, 2
      %s1441 = smul.addr %s1440, 4
      %s1442 = scalar_lea.vmem %s14, %s1441
      // Predicated region
      $region77: #{denoising_block_forward.1} parent=75 // pred_check
        %p1443 = pneg %p342
      $region78: #{denoising_block_forward.1} parent=75 // pred_check_branch
        %1445 = sbr.rel (%p1443) target = $region80
      $region79: #{denoising_block_forward.1} parent=75 // pred_region
        _
      $region80: #{denoising_block_forward.1} parent=75 // pred_fallthru
        _
    $region76: #{denoising_block_forward.1} parent=5 // pred_fallthru
      _
    %p1446 = scmp.le.s32.totalorder 2, %s20
    // Predicated region
    $region81: #{denoising_block_forward.1} parent=5 // pred_check
      %p1447 = pneg %p1446
    $region82: #{denoising_block_forward.1} parent=5 // pred_check_branch
      %1449 = sbr.rel (%p1447) target = $region84
    $region83: #{denoising_block_forward.1} parent=5 // pred_region
      %s1450 = ssub.s32 %s20, 2
      // Predicated region
      $region85: #{denoising_block_forward.1} parent=83 // pred_check
        %p1451 = pneg %p348
      $region86: #{denoising_block_forward.1} parent=83 // pred_check_branch
        %1453 = sbr.rel (%p1451) target = $region88
      $region87: #{denoising_block_forward.1} parent=83 // pred_region
        %p1454 = scmp.lt.s32.totalorder %s26, 1
        %s1455 = scalar_select %p1454, %s26, 1
        %s1456 = smul.addr %s1455, 2
        %s1457 = smul.addr %s1456, 4
        %s1458 = scalar_lea.vmem %s14, %s1457
      $region88: #{denoising_block_forward.1} parent=83 // pred_fallthru
        _
    $region84: #{denoising_block_forward.1} parent=5 // pred_fallthru
      _
  $region6: #{denoising_block_forward.1} parent=0 // loop_footer
    %s24 = sadd.s32 1, %s20
  $region7: #{denoising_block_forward.1} parent=0 // loop_footer_branch
    %19 = sbr.rel target = $region3
  $region8: #{denoising_block_forward.1} parent=0 // loop_exit
    _

</llo_original>
